<compile_context>
chip_gen: v7x
topology: tpu7x:2x2x1
jax: 0.10.0
libtpu: 0.0.40
codegen_flags: <defaults>
</compile_context>

<pallas_src>
import functools

import jax
import jax.numpy as jnp
from jax.experimental import pallas as pl
from jax.experimental.pallas import tpu as pltpu

# ---------------- problem sizes (small, consistent with the module) ----------
NUM_INSTANCES = 4          # independent layer invocations
BATCH = 2                  # graphs per DGL batch
N_PER_GRAPH = 16           # nodes per graph == max_node_num (all equal in ContrastPool)
TOTAL_N = BATCH * N_PER_GRAPH
INPUT_DIM = 8              # input node-feature dim
OUT_FEAT_DIM = 8           # output_feat_dim of feat_gc
ASSIGN_DIM = 4             # assign_dim
POOL_DIM = BATCH * ASSIGN_DIM
LANES = 128                # width of the lane-dense packed output slab


def _const_layout(K, B, N, A, F, D):
    """Lane offsets of the packed grid-invariant constant/parameter tile."""
    SK = K * B * A
    lay = {
        "mask": 0,                      # (R, SK)  block-diagonal pattern
        "tile": SK,                     # (A, SK)  column-tiling matrix E
        "sel": 2 * SK,                  # (R, SK)  per-instance row selector
        "ws": 3 * SK,                   # (2D, F)  stacked GraphSage weight
        "wp": 3 * SK + F,               # (N, A)   pooling weight
        "bs": 3 * SK + F + A,           # (1, F)   sage bias
        "bp": 3 * SK + 2 * F + A,       # (1, A)   pooling bias
    }
    lay["width"] = 3 * SK + 2 * F + 2 * A
    return lay


def _preferred_grid_steps():
    """2 grid steps on chips with 2 TensorCores (v4/v5p megacore, v7x) so the
    'parallel' axis gives each core exactly one step; otherwise collapse to 1."""
    try:
        kind = jax.devices()[0].device_kind.lower()
    except Exception:
        return 1
    if "v7" in kind or "v4" in kind or "v5p" in kind:
        return 2
    return 1


def _diffcs_kernel(K, B, N, A, F, D, const_ref, data_ref, out_ref):
    f32 = jnp.float32
    T = B * N                 # nodes per instance
    S = B * A                 # pooled nodes per instance
    R = K * T                 # stacked rows per grid step
    SK = K * S                # stacked assign columns per grid step
    slab_rows = max(8, -(-SK // 8) * 8)
    lay = _const_layout(K, B, N, A, F, D)

    # ---- grid-invariant constants & parameters (one packed tile) -----------------
    mask = const_ref[:, lay["mask"]:lay["mask"] + SK]         # (R, SK)
    tile_e = const_ref[0:A, lay["tile"]:lay["tile"] + SK]     # (A, SK)
    sel_t = const_ref[:, lay["sel"]:lay["sel"] + SK]          # (R, SK)
    w_sage = const_ref[0:2 * D, lay["ws"]:lay["ws"] + F]      # (2D, F)
    w_pool = const_ref[0:N, lay["wp"]:lay["wp"] + A]          # (N, A)
    b_sage = const_ref[0:1, lay["bs"]:lay["bs"] + F]          # (1, F)
    b_pool = const_ref[0:1, lay["bp"]:lay["bp"] + A]          # (1, A)

    # ---- per-step packed data slab -------------------------------------------------
    adj_b = data_ref[:, 0:R]                                  # instance-block-diag adjacency
    adj_c = data_ref[:, R:2 * R]                              # (instance,graph)-block-diag contrast adj
    h = data_ref[:, 2 * R:2 * R + D]                          # (R, D)
    diff_h = data_ref[:, 2 * R + D:2 * R + D + N]             # (R, N) diff_h repeated per graph

    # ---- assignment (contrast-subgraph / diff_h branch) ----------------------------
    support = jnp.dot(diff_h, w_pool, preferred_element_type=f32)            # (R, A)
    logits = jnp.dot(adj_c, support, preferred_element_type=f32) + b_pool    # (R, A)

    # masked_softmax(logits.repeat(B,B), block_diag(ones(N,A)), memory_efficient=False)
    # factorized per row (uniform graph sizes): the (B-1)*A masked zero lanes add
    # exp(-m) terms to the normalizer; the +1e-13 renormalization is reproduced exactly.
    m = jnp.maximum(jnp.max(logits, axis=-1, keepdims=True), 0.0)
    ex = jnp.exp(logits - m)
    s_row = jnp.sum(ex, axis=-1, keepdims=True)
    z_row = s_row + float((B - 1) * A) * jnp.exp(-m)
    p = ex / (s_row + 1e-13 * z_row)                                          # (R, A)

    # block-diagonal assign (R, SK): tile columns with one tiny MXU pass, then mask.
    assign = jnp.dot(p, tile_e, preferred_element_type=f32) * mask            # (R, SK)

    # ---- feat_gc : GraphSage (mean aggregator) -------------------------------------
    # TODO(synk): GraphSageLayer source is not part of the provided module; a DGL-style
    # mean aggregator (mean-neighbor, concat->linear->L2norm->ReLU; dropout/batchnorm
    # identity in eval mode) is used.
    deg = jnp.sum(adj_b, axis=1, keepdims=True)
    # one MXU pass computes both the neighbor sum (adj_b @ h) and adj_b @ assign
    nbr = jnp.dot(adj_b, jnp.concatenate([h, assign], axis=1),
                  preferred_element_type=f32)                                  # (R, D+SK)
    h_neigh = nbr[:, :D] / jnp.maximum(deg, 1.0)
    adj_q = nbr[:, D:]                                                         # (R, SK) = adj_b @ assign

    bundle = jnp.dot(jnp.concatenate([h, h_neigh], axis=1), w_sage,
                     preferred_element_type=f32) + b_sage                      # (R, F)
    sumsq = jnp.sum(bundle * bundle, axis=1, keepdims=True)
    feat = jnp.maximum(bundle * jax.lax.rsqrt(jnp.maximum(sumsq, 1e-24)), 0.0)

    # ---- fused assign^T @ [feat | adj_b @ assign] -----------------------------------
    pooled = jax.lax.dot_general(assign, jnp.concatenate([feat, adj_q], axis=1),
                                 (((0,), (0,)), ((), ())),
                                 preferred_element_type=f32)                   # (SK, F+SK)
    # pooled[:, :F] = h_pool (instances stacked); pooled[:, F:] = adj_new (block-diag)

    # ---- link prediction loss (direct residual: numerically robust) -----------------
    qqt = jax.lax.dot_general(assign, assign, (((1,), (1,)), ((), ())),
                              preferred_element_type=f32)                      # (R, R)
    resid = adj_b - qqt
    row_sq = jnp.sum(resid * resid, axis=1, keepdims=True)                     # (R, 1)

    # ---- entropy regularizer ----------------------------------------------------------
    # Categorical(probs=assign).entropy().sum(-1).mean(-1); zero lanes contribute 0 and
    # every p row already appears once per graph in the stacked layout.
    eps = 1.1920929e-07    # torch clamp_probs eps for float32
    pn = p / jnp.sum(p, axis=-1, keepdims=True)
    logp = jnp.log(jnp.minimum(jnp.maximum(pn, eps), 1.0 - eps))
    row_ent = -jnp.sum(pn * logp, axis=-1, keepdims=True)                      # (R, 1)

    # ---- per-instance reductions via one selector matmul ------------------------------
    stats = jax.lax.dot_general(sel_t, jnp.concatenate([row_sq, row_ent], axis=1),
                                (((0,), (0,)), ((), ())),
                                preferred_element_type=f32)                    # (SK, 2)
    lp_col = jnp.sqrt(stats[:, 0:1]) * (1.0 / float(T * T))                    # rows >= K are 0
    ent_col = stats[:, 1:2]

    # ---- single full-width lane-dense store --------------------------------------------
    fill = jnp.zeros((SK, LANES - (F + SK + 2)), f32)
    slab = jnp.concatenate([pooled, lp_col, ent_col, fill], axis=1)            # (SK, 128)
    if slab_rows > SK:
        slab = jnp.concatenate([slab, jnp.zeros((slab_rows - SK, LANES), f32)], axis=0)
    out_ref[...] = slab


def diffcs_forward(h, adj_batched, diff_h, adj_contrast,
                   w_sage_self, w_sage_neigh, b_sage, w_pool, b_pool,
                   instances_per_step=None):
    """DiffCSLayer forward, batched over a leading axis of independent instances."""
    f32 = jnp.float32
    num_inst, T, D = h.shape
    N = diff_h.shape[1]
    F = w_sage_self.shape[1]
    A = w_pool.shape[1]
    assert T % N == 0, "ContrastPool assumes uniform graph sizes (max_node_num)"
    B = T // N
    S = B * A

    if instances_per_step is None:
        steps = _preferred_grid_steps()
        if steps < 1 or num_inst % steps != 0:
            steps = 1
        K = num_inst // steps
    else:
        K = instances_per_step
        assert num_inst % K == 0
        steps = num_inst // K

    R = K * T
    SK = K * S
    slab_rows = max(8, -(-SK // 8) * 8)
    assert F + SK + 2 <= LANES, "output slab does not fit in 128 lanes; lower K"
    lay = _const_layout(K, B, N, A, F, D)

    # ---- grid-invariant packed constant / parameter tile --------------------------------
    r_blk = (jnp.arange(R) // N)[:, None]
    c_blk = (jnp.arange(SK) // A)[None, :]
    mask = (r_blk == c_blk).astype(f32)                           # (R, SK) block-diag pattern
    tile_e = jnp.tile(jnp.eye(A, dtype=f32), (1, K * B))          # (A, SK) column tiling
    sel_t = ((jnp.arange(R) // T)[:, None]
             == jnp.arange(SK)[None, :]).astype(f32)              # (R, SK) instance selector
    w_sage = jnp.concatenate([w_sage_self, w_sage_neigh], axis=0)  # (2D, F)

    const = jnp.zeros((R, lay["width"]), f32)
    const = const.at[:, lay["mask"]:lay["mask"] + SK].set(mask)
    const = const.at[0:A, lay["tile"]:lay["tile"] + SK].set(tile_e)
    const = const.at[:, lay["sel"]:lay["sel"] + SK].set(sel_t)
    const = const.at[0:2 * D, lay["ws"]:lay["ws"] + F].set(w_sage)
    const = const.at[0:N, lay["wp"]:lay["wp"] + A].set(w_pool)
    const = const.at[0:1, lay["bs"]:lay["bs"] + F].set(b_sage)
    const = const.at[0:1, lay["bp"]:lay["bp"] + A].set(b_pool)

    # ---- per-step packed data slab: [adj_big | adj_contrast_big | h | diff_h_rep] -------
    L_in = 2 * R + D + N
    data = jnp.zeros((steps, R, L_in), f32)
    for s in range(steps):
        for k in range(K):
            i = s * K + k
            r0 = k * T
            data = data.at[s, r0:r0 + T, r0:r0 + T].set(adj_batched[i])
            for b in range(B):
                q0 = r0 + b * N
                data = data.at[s, q0:q0 + N, R + q0:R + q0 + N].set(adj_contrast[i])
            data = data.at[s, r0:r0 + T, 2 * R:2 * R + D].set(h[i])
            data = data.at[s, r0:r0 + T, 2 * R + D:2 * R + D + N].set(
                jnp.tile(diff_h[i], (B, 1)))

    kernel = functools.partial(_diffcs_kernel, K, B, N, A, F, D)
    grid_spec = pltpu.PrefetchScalarGridSpec(
        num_scalar_prefetch=0,
        grid=(steps,),
        in_specs=[
            pl.BlockSpec((R, lay["width"]), lambda s: (0, 0)),      # packed constants/params
            pl.BlockSpec((None, R, L_in), lambda s: (s, 0, 0)),     # packed per-step data slab
        ],
        out_specs=pl.BlockSpec((None, slab_rows, LANES), lambda s: (s, 0, 0)),
    )
    slab = pl.pallas_call(
        kernel,
        out_shape=jax.ShapeDtypeStruct((steps, slab_rows, LANES), f32),
        grid_spec=grid_spec,
        compiler_params=pltpu.CompilerParams(dimension_semantics=("parallel",)),
    )(const, data)

    # ---- unpack the lane-dense slab -------------------------------------------------------
    adj_new, h_pool, link_loss, entropy = [], [], [], []
    for i in range(num_inst):
        s, k = divmod(i, K)
        rows = slab[s, k * S:(k + 1) * S, :]
        h_pool.append(rows[:, 0:F])
        adj_new.append(rows[:, F + k * S:F + (k + 1) * S])
        link_loss.append(slab[s, k, F + SK])
        entropy.append(slab[s, k, F + SK + 1])
    return (jnp.stack(adj_new), jnp.stack(h_pool),
            jnp.stack(link_loss), jnp.stack(entropy))


if __name__ == "__main__":
    key = jax.random.PRNGKey(0)
    keys = jax.random.split(key, 5)

    I, B, N = NUM_INSTANCES, BATCH, N_PER_GRAPH

    # deterministic symmetric 0/1 per-graph adjacencies -> block-diagonal batched adj
    a = (jax.random.uniform(keys[0], (I, B, N, N)) < 0.3).astype(jnp.float32)
    a = jnp.maximum(a, jnp.swapaxes(a, -1, -2))
    adj_batched = jnp.zeros((I, TOTAL_N, TOTAL_N), jnp.float32)
    for b in range(B):
        adj_batched = adj_batched.at[:, b * N:(b + 1) * N, b * N:(b + 1) * N].set(a[:, b])

    h = jax.random.normal(keys[1], (I, TOTAL_N, INPUT_DIM), jnp.float32)
    diff_h = jax.random.normal(keys[2], (I, N, N), jnp.float32)
    adj_contrast = (jax.random.uniform(keys[3], (I, N, N)) < 0.3).astype(jnp.float32)

    # parameters (shared across instances, matching the module's __init__ shapes)
    pkeys = jax.random.split(keys[4], 5)
    stdv = 1.0 / (ASSIGN_DIM ** 0.5)
    w_pool = jax.random.uniform(pkeys[0], (N, ASSIGN_DIM),
                                minval=-stdv, maxval=stdv, dtype=jnp.float32)
    b_pool = jax.random.uniform(pkeys[1], (1, ASSIGN_DIM),
                                minval=-stdv, maxval=stdv, dtype=jnp.float32)
    w_sage_self = jax.random.normal(pkeys[2], (INPUT_DIM, OUT_FEAT_DIM), jnp.float32) * 0.1
    w_sage_neigh = jax.random.normal(pkeys[3], (INPUT_DIM, OUT_FEAT_DIM), jnp.float32) * 0.1
    b_sage = jax.random.normal(pkeys[4], (1, OUT_FEAT_DIM), jnp.float32) * 0.1

    adj_new, h_pool, link_loss, entropy = diffcs_forward(
        h, adj_batched, diff_h, adj_contrast,
        w_sage_self, w_sage_neigh, b_sage, w_pool, b_pool)

    jax.block_until_ready((adj_new, h_pool, link_loss, entropy))
    assert adj_new.shape == (I, POOL_DIM, POOL_DIM)
    assert h_pool.shape == (I, POOL_DIM, OUT_FEAT_DIM)
    assert link_loss.shape == (I,)
    assert entropy.shape == (I,)
    assert bool(jnp.all(jnp.isfinite(adj_new)))
    assert bool(jnp.all(jnp.isfinite(h_pool)))
    assert bool(jnp.all(jnp.isfinite(link_loss)))
    assert bool(jnp.all(jnp.isfinite(entropy)))
    print("KERNEL_OK")
</pallas_src>

<mosaic_0001>
module attributes {stable_mosaic.version = 11 : i64} {
  func.func @_diffcs_kernel(%arg0: i32, %arg1: memref<128x120xf32, #tpu.memory_space<vmem>>, %arg2: memref<1x128x280xf32, #tpu.memory_space<vmem>>, %arg3: memref<1x32x128xf32, #tpu.memory_space<vmem>>) attributes {dimension_semantics = [#tpu.dimension_semantics<parallel>], iteration_bounds = array<i64: 1>, scalar_prefetch = 0 : i64, scratch_operands = 0 : i64, tpu.core_type = #tpu.core_type<tc>, window_params = [{pipeline_mode = #tpu.pipeline_mode<synchronous>, transform_indices = @transform_0, window_bounds = array<i64: 128, 120>}, {transform_indices = @transform_1, window_bounds = array<i64: 1, 128, 280>}, {transform_indices = @transform_2, window_bounds = array<i64: 1, 32, 128>}]} {
    %c0 = arith.constant 0 : index
    %c0_0 = arith.constant 0 : index
    %0 = vector.load %arg1[%c0, %c0_0] : memref<128x120xf32, #tpu.memory_space<vmem>>, vector<128x32xf32>
    %c0_1 = arith.constant 0 : index
    %c32 = arith.constant 32 : index
    %1 = vector.load %arg1[%c0_1, %c32] : memref<128x120xf32, #tpu.memory_space<vmem>>, vector<4x32xf32>
    %c0_2 = arith.constant 0 : index
    %c64 = arith.constant 64 : index
    %2 = vector.load %arg1[%c0_2, %c64] : memref<128x120xf32, #tpu.memory_space<vmem>>, vector<128x32xf32>
    %c0_3 = arith.constant 0 : index
    %c96 = arith.constant 96 : index
    %3 = vector.load %arg1[%c0_3, %c96] : memref<128x120xf32, #tpu.memory_space<vmem>>, vector<16x8xf32>
    %c0_4 = arith.constant 0 : index
    %c104 = arith.constant 104 : index
    %4 = vector.load %arg1[%c0_4, %c104] : memref<128x120xf32, #tpu.memory_space<vmem>>, vector<16x4xf32>
    %c0_5 = arith.constant 0 : index
    %c108 = arith.constant 108 : index
    %5 = vector.load %arg1[%c0_5, %c108] : memref<128x120xf32, #tpu.memory_space<vmem>>, vector<1x8xf32>
    %c0_6 = arith.constant 0 : index
    %c116 = arith.constant 116 : index
    %6 = vector.load %arg1[%c0_6, %c116] : memref<128x120xf32, #tpu.memory_space<vmem>>, vector<1x4xf32>
    %c0_7 = arith.constant 0 : index
    %c0_8 = arith.constant 0 : index
    %c0_9 = arith.constant 0 : index
    %7 = vector.load %arg2[%c0_7, %c0_8, %c0_9] : memref<1x128x280xf32, #tpu.memory_space<vmem>>, vector<1x128x128xf32>
    %8 = vector.shape_cast %7 : vector<1x128x128xf32> to vector<128x128xf32>
    %c0_10 = arith.constant 0 : index
    %c0_11 = arith.constant 0 : index
    %c128 = arith.constant 128 : index
    %9 = vector.load %arg2[%c0_10, %c0_11, %c128] : memref<1x128x280xf32, #tpu.memory_space<vmem>>, vector<1x128x128xf32>
    %10 = vector.shape_cast %9 : vector<1x128x128xf32> to vector<128x128xf32>
    %c0_12 = arith.constant 0 : index
    %c0_13 = arith.constant 0 : index
    %c256 = arith.constant 256 : index
    %11 = vector.load %arg2[%c0_12, %c0_13, %c256] : memref<1x128x280xf32, #tpu.memory_space<vmem>>, vector<1x128x8xf32>
    %12 = vector.shape_cast %11 : vector<1x128x8xf32> to vector<128x8xf32>
    %c0_14 = arith.constant 0 : index
    %c0_15 = arith.constant 0 : index
    %c264 = arith.constant 264 : index
    %13 = vector.load %arg2[%c0_14, %c0_15, %c264] : memref<1x128x280xf32, #tpu.memory_space<vmem>>, vector<1x128x16xf32>
    %14 = vector.shape_cast %13 : vector<1x128x16xf32> to vector<128x16xf32>
    %cst = arith.constant dense<0.000000e+00> : vector<128x4xf32>
    %15 = tpu.matmul %14, %4, %cst {dimension_numbers = #tpu.dot_dimension_numbers<[1], [0], [0], [1], [0, 0, 1, 1], [], []>} : vector<128x16xf32>, vector<16x4xf32>, vector<128x4xf32> -> vector<128x4xf32>
    %cst_16 = arith.constant dense<0.000000e+00> : vector<128x4xf32>
    %16 = tpu.matmul %10, %15, %cst_16 {dimension_numbers = #tpu.dot_dimension_numbers<[1], [0], [0], [1], [0, 0, 1, 1], [], []>} : vector<128x128xf32>, vector<128x4xf32>, vector<128x4xf32> -> vector<128x4xf32>
    %17 = vector.broadcast %6 : vector<1x4xf32> to vector<128x4xf32>
    %18 = arith.addf %16, %17 : vector<128x4xf32>
    %cst_17 = arith.constant dense<0xFF800000> : vector<128xf32>
    %19 = vector.multi_reduction <maximumf>, %18, %cst_17 [1] : vector<128x4xf32> to vector<128xf32>
    %20 = vector.shape_cast %19 : vector<128xf32> to vector<128x1xf32>
    %cst_18 = arith.constant 0.000000e+00 : f32
    %21 = vector.broadcast %cst_18 : f32 to vector<128x1xf32>
    %22 = arith.maximumf %20, %21 : vector<128x1xf32>
    %23 = vector.broadcast %22 : vector<128x1xf32> to vector<128x4xf32>
    %24 = arith.subf %18, %23 : vector<128x4xf32>
    %25 = math.exp %24 : vector<128x4xf32>
    %cst_19 = arith.constant dense<0.000000e+00> : vector<128xf32>
    %26 = vector.multi_reduction <add>, %25, %cst_19 [1] : vector<128x4xf32> to vector<128xf32>
    %27 = vector.shape_cast %26 : vector<128xf32> to vector<128x1xf32>
    %cst_20 = arith.constant 0.000000e+00 : f32
    %28 = vector.broadcast %cst_20 : f32 to vector<128x1xf32>
    %29 = arith.subf %28, %22 : vector<128x1xf32>
    %30 = math.exp %29 : vector<128x1xf32>
    %cst_21 = arith.constant 4.000000e+00 : f32
    %31 = vector.broadcast %cst_21 : f32 to vector<128x1xf32>
    %32 = arith.mulf %31, %30 : vector<128x1xf32>
    %33 = arith.addf %27, %32 : vector<128x1xf32>
    %cst_22 = arith.constant 9.99999982E-14 : f32
    %34 = vector.broadcast %cst_22 : f32 to vector<128x1xf32>
    %35 = arith.mulf %34, %33 : vector<128x1xf32>
    %36 = arith.addf %27, %35 : vector<128x1xf32>
    %37 = vector.broadcast %36 : vector<128x1xf32> to vector<128x4xf32>
    %38 = arith.divf %25, %37 : vector<128x4xf32>
    %cst_23 = arith.constant dense<0.000000e+00> : vector<128x32xf32>
    %39 = tpu.matmul %38, %1, %cst_23 {dimension_numbers = #tpu.dot_dimension_numbers<[1], [0], [0], [1], [0, 0, 1, 1], [], []>} : vector<128x4xf32>, vector<4x32xf32>, vector<128x32xf32> -> vector<128x32xf32>
    %40 = arith.mulf %39, %0 : vector<128x32xf32>
    %cst_24 = arith.constant dense<0.000000e+00> : vector<128xf32>
    %41 = vector.multi_reduction <add>, %8, %cst_24 [1] : vector<128x128xf32> to vector<128xf32>
    %42 = vector.shape_cast %41 : vector<128xf32> to vector<128x1xf32>
    %43 = tpu.concatenate %12, %40 in 1 : vector<128x8xf32>, vector<128x32xf32> -> vector<128x40xf32>
    %cst_25 = arith.constant dense<0.000000e+00> : vector<128x40xf32>
    %44 = tpu.matmul %8, %43, %cst_25 {dimension_numbers = #tpu.dot_dimension_numbers<[1], [0], [0], [1], [0, 0, 1, 1], [], []>} : vector<128x128xf32>, vector<128x40xf32>, vector<128x40xf32> -> vector<128x40xf32>
    %45 = vector.extract_strided_slice %44 {offsets = [0, 0], sizes = [128, 8], strides = [1, 1]} : vector<128x40xf32> to vector<128x8xf32>
    %cst_26 = arith.constant 1.000000e+00 : f32
    %46 = vector.broadcast %cst_26 : f32 to vector<128x1xf32>
    %47 = arith.maximumf %42, %46 : vector<128x1xf32>
    %48 = vector.broadcast %47 : vector<128x1xf32> to vector<128x8xf32>
    %49 = arith.divf %45, %48 : vector<128x8xf32>
    %50 = vector.extract_strided_slice %44 {offsets = [0, 8], sizes = [128, 32], strides = [1, 1]} : vector<128x40xf32> to vector<128x32xf32>
    %51 = tpu.concatenate %12, %49 in 1 : vector<128x8xf32>, vector<128x8xf32> -> vector<128x16xf32>
    %cst_27 = arith.constant dense<0.000000e+00> : vector<128x8xf32>
    %52 = tpu.matmul %51, %3, %cst_27 {dimension_numbers = #tpu.dot_dimension_numbers<[1], [0], [0], [1], [0, 0, 1, 1], [], []>} : vector<128x16xf32>, vector<16x8xf32>, vector<128x8xf32> -> vector<128x8xf32>
    %53 = vector.broadcast %5 : vector<1x8xf32> to vector<128x8xf32>
    %54 = arith.addf %52, %53 : vector<128x8xf32>
    %55 = arith.mulf %54, %54 : vector<128x8xf32>
    %cst_28 = arith.constant dense<0.000000e+00> : vector<128xf32>
    %56 = vector.multi_reduction <add>, %55, %cst_28 [1] : vector<128x8xf32> to vector<128xf32>
    %57 = vector.shape_cast %56 : vector<128xf32> to vector<128x1xf32>
    %cst_29 = arith.constant 1.000000e-24 : f32
    %58 = vector.broadcast %cst_29 : f32 to vector<128x1xf32>
    %59 = arith.maximumf %57, %58 : vector<128x1xf32>
    %60 = math.rsqrt %59 : vector<128x1xf32>
    %61 = vector.broadcast %60 : vector<128x1xf32> to vector<128x8xf32>
    %62 = arith.mulf %54, %61 : vector<128x8xf32>
    %cst_30 = arith.constant 0.000000e+00 : f32
    %63 = vector.broadcast %cst_30 : f32 to vector<128x8xf32>
    %64 = arith.maximumf %62, %63 : vector<128x8xf32>
    %65 = tpu.concatenate %64, %50 in 1 : vector<128x8xf32>, vector<128x32xf32> -> vector<128x40xf32>
    %cst_31 = arith.constant dense<0.000000e+00> : vector<32x40xf32>
    %66 = tpu.matmul %40, %65, %cst_31 {dimension_numbers = #tpu.dot_dimension_numbers<[0], [0], [1], [1], [0, 1, 1, 1], [], []>} : vector<128x32xf32>, vector<128x40xf32>, vector<32x40xf32> -> vector<32x40xf32>
    %cst_32 = arith.constant dense<0.000000e+00> : vector<128x128xf32>
    %67 = tpu.matmul %40, %40, %cst_32 {dimension_numbers = #tpu.dot_dimension_numbers<[1], [1], [0], [0], [0, 0, 1, 0], [], []>} : vector<128x32xf32>, vector<128x32xf32>, vector<128x128xf32> -> vector<128x128xf32>
    %68 = arith.subf %8, %67 : vector<128x128xf32>
    %69 = arith.mulf %68, %68 : vector<128x128xf32>
    %cst_33 = arith.constant dense<0.000000e+00> : vector<128xf32>
    %70 = vector.multi_reduction <add>, %69, %cst_33 [1] : vector<128x128xf32> to vector<128xf32>
    %71 = vector.shape_cast %70 : vector<128xf32> to vector<128x1xf32>
    %cst_34 = arith.constant dense<0.000000e+00> : vector<128xf32>
    %72 = vector.multi_reduction <add>, %38, %cst_34 [1] : vector<128x4xf32> to vector<128xf32>
    %73 = vector.shape_cast %72 : vector<128xf32> to vector<128x1xf32>
    %74 = vector.broadcast %73 : vector<128x1xf32> to vector<128x4xf32>
    %75 = arith.divf %38, %74 : vector<128x4xf32>
    %cst_35 = arith.constant 1.1920929E-7 : f32
    %76 = vector.broadcast %cst_35 : f32 to vector<128x4xf32>
    %77 = arith.maximumf %75, %76 : vector<128x4xf32>
    %cst_36 = arith.constant 0.99999988 : f32
    %78 = vector.broadcast %cst_36 : f32 to vector<128x4xf32>
    %79 = arith.minimumf %77, %78 : vector<128x4xf32>
    %80 = math.log %79 : vector<128x4xf32>
    %81 = arith.mulf %75, %80 : vector<128x4xf32>
    %cst_37 = arith.constant dense<0.000000e+00> : vector<128xf32>
    %82 = vector.multi_reduction <add>, %81, %cst_37 [1] : vector<128x4xf32> to vector<128xf32>
    %83 = vector.shape_cast %82 : vector<128xf32> to vector<128x1xf32>
    %cst_38 = arith.constant 0.000000e+00 : f32
    %84 = vector.broadcast %cst_38 : f32 to vector<128x1xf32>
    %85 = arith.subf %84, %83 : vector<128x1xf32>
    %86 = tpu.concatenate %71, %85 in 1 : vector<128x1xf32>, vector<128x1xf32> -> vector<128x2xf32>
    %cst_39 = arith.constant dense<0.000000e+00> : vector<32x2xf32>
    %87 = tpu.matmul %2, %86, %cst_39 {dimension_numbers = #tpu.dot_dimension_numbers<[0], [0], [1], [1], [0, 1, 1, 1], [], []>} : vector<128x32xf32>, vector<128x2xf32>, vector<32x2xf32> -> vector<32x2xf32>
    %88 = vector.extract_strided_slice %87 {offsets = [0, 0], sizes = [32, 1], strides = [1, 1]} : vector<32x2xf32> to vector<32x1xf32>
    %89 = math.sqrt %88 : vector<32x1xf32>
    %cst_40 = arith.constant 9.765625E-4 : f32
    %90 = vector.broadcast %cst_40 : f32 to vector<32x1xf32>
    %91 = arith.mulf %89, %90 : vector<32x1xf32>
    %92 = vector.extract_strided_slice %87 {offsets = [0, 1], sizes = [32, 1], strides = [1, 1]} : vector<32x2xf32> to vector<32x1xf32>
    %cst_41 = arith.constant 0.000000e+00 : f32
    %93 = vector.broadcast %cst_41 : f32 to vector<32x86xf32>
    %94 = tpu.concatenate %66, %91, %92, %93 in 1 : vector<32x40xf32>, vector<32x1xf32>, vector<32x1xf32>, vector<32x86xf32> -> vector<32x128xf32>
    %c0_42 = arith.constant 0 : index
    %c0_43 = arith.constant 0 : index
    %c0_44 = arith.constant 0 : index
    %95 = vector.load %arg3[%c0_42, %c0_43, %c0_44] : memref<1x32x128xf32, #tpu.memory_space<vmem>>, vector<1x32x128xf32>
    %96 = vector.shape_cast %95 : vector<1x32x128xf32> to vector<32x128xf32>
    %97 = vector.shape_cast %94 : vector<32x128xf32> to vector<1x32x128xf32>
    tpu.vector_store %arg3[%c0_42, %c0_43, %c0_44], %97 {strides = array<i32>} : memref<1x32x128xf32, #tpu.memory_space<vmem>>, vector<1x32x128xf32>,
    return
  }
  func.func @transform_0(%arg0: i32) -> (i32, i32) {
    %c0_i32 = arith.constant 0 : i32
    %c0_i32_0 = arith.constant 0 : i32
    %c0_i32_1 = arith.constant 0 : i32
    return %c0_i32, %c0_i32_0 : i32, i32
  }
  func.func @transform_1(%arg0: i32) -> (i32, i32, i32) {
    %c0_i32 = arith.constant 0 : i32
    %c0_i32_0 = arith.constant 0 : i32
    %c0_i32_1 = arith.constant 0 : i32
    return %arg0, %c0_i32, %c0_i32_0 : i32, i32, i32
  }
  func.func @transform_2(%arg0: i32) -> (i32, i32, i32) {
    %c0_i32 = arith.constant 0 : i32
    %c0_i32_0 = arith.constant 0 : i32
    %c0_i32_1 = arith.constant 0 : i32
    return %arg0, %c0_i32, %c0_i32_0 : i32, i32, i32
  }
}

</mosaic_0001>

<llo_original>
// kernel: tpu_custom_call.1
$region0: #{tpu_custom_call.1}
  #allocation0 [shape = 'u32[]', space=smem, size = 0x4, offset = 0x4, fixed_abs, tag = 'smem constant byte address 0x4 - core index']
  #allocation1 [shape = 'u32[144,128]{1,0:T(1,128)}', space=vmem, size = 0x12000, scoped, tag = 'internal scratch']
  %s0 = inlined_call_operand.vmem [shape: f32[128,120], index: 0, kind: input, shape index: {}]
  %s1 = inlined_call_operand.vmem [shape: f32[1,128,280], index: 1, kind: input, shape index: {}]
  %s2 = inlined_call_operand.hbm [shape: f32[1,32,128], index: 2, kind: output, shape index: {}]
  %s3 = sld [smem:[#allocation0]]
  $region18: #{tpu_custom_call.1} parent=0
    _
  %s5 = ssub.s32 1, %s3
  %s6 = scalar_select 0, %s5, %s3
  $region1: #{tpu_custom_call.1} parent=0
    #allocation2 [shape = 'u8[16384]{0}', space=vmem, size = 0x4000, scoped, tag = 'output window, operand 0, single buffered']
    #allocation3 [shape = 's32[1]{0}', space=sflag, size = 0x4, scoped, tag = 'scoped memory for tpu_custom_call.1']
    %7 = vsyncpa [#allocation3], 0
    // Predicated region
    $region2: #{tpu_custom_call.1} parent=1 // pred_check
      _
    $region3: #{tpu_custom_call.1} parent=1 // pred_check_branch
      %9 = sbr.rel (0) target = $region5
    $region4: #{tpu_custom_call.1} parent=1 // pred_region
      _
    $region5: #{tpu_custom_call.1} parent=1 // pred_fallthru
      _
    // Predicated region
    $region6: #{tpu_custom_call.1} parent=1 // pred_check
      _
    $region7: #{tpu_custom_call.1} parent=1 // pred_check_branch
      %11 = sbr.rel (0) target = $region9
    $region8: #{tpu_custom_call.1} parent=1 // pred_region
      _
    $region9: #{tpu_custom_call.1} parent=1 // pred_fallthru
      _
    %v12 = vld [vmem:[%s0] sm:$0xff]
    %v13 = vld [vmem:[%s0 + $0x8] sm:$0xff]
    %v14 = vld [vmem:[%s0 + $0x10] sm:$0xff]
    %v15 = vld [vmem:[%s0 + $0x18] sm:$0xff]
    %v16 = vld [vmem:[%s0 + $0x20] sm:$0xff]
    %v17 = vld [vmem:[%s0 + $0x28] sm:$0xff]
    %v18 = vld [vmem:[%s0 + $0x30] sm:$0xff]
    %v19 = vld [vmem:[%s0 + $0x38] sm:$0xff]
    %v20 = vld [vmem:[%s0 + $0x40] sm:$0xff]
    %v21 = vld [vmem:[%s0 + $0x48] sm:$0xff]
    %v22 = vld [vmem:[%s0 + $0x50] sm:$0xff]
    %v23 = vld [vmem:[%s0 + $0x58] sm:$0xff]
    %v24 = vld [vmem:[%s0 + $0x60] sm:$0xff]
    %v25 = vld [vmem:[%s0 + $0x68] sm:$0xff]
    %v26 = vld [vmem:[%s0 + $0x70] sm:$0xff]
    %v27 = vld [vmem:[%s0 + $0x78] sm:$0xff]
    %v28 = vld [vmem:[%s0] sm:$0xf]
    %v29 = vld [vmem:[%s0] sm:$0x1]
    %v30 = vld [vmem:[%s1] sm:$0xff]
    %v31 = vld [vmem:[%s1 + $0x18] sm:$0xff]
    %v32 = vld [vmem:[%s1 + $0x30] sm:$0xff]
    %v33 = vld [vmem:[%s1 + $0x48] sm:$0xff]
    %v34 = vld [vmem:[%s1 + $0x60] sm:$0xff]
    %v35 = vld [vmem:[%s1 + $0x78] sm:$0xff]
    %v36 = vld [vmem:[%s1 + $0x90] sm:$0xff]
    %v37 = vld [vmem:[%s1 + $0xa8] sm:$0xff]
    %v38 = vld [vmem:[%s1 + $0xc0] sm:$0xff]
    %v39 = vld [vmem:[%s1 + $0xd8] sm:$0xff]
    %v40 = vld [vmem:[%s1 + $0xf0] sm:$0xff]
    %v41 = vld [vmem:[%s1 + $0x108] sm:$0xff]
    %v42 = vld [vmem:[%s1 + $0x120] sm:$0xff]
    %v43 = vld [vmem:[%s1 + $0x138] sm:$0xff]
    %v44 = vld [vmem:[%s1 + $0x150] sm:$0xff]
    %v45 = vld [vmem:[%s1 + $0x168] sm:$0xff]
    %v46 = vld [vmem:[%s1 + $0x8] sm:$0xff]
    %v47 = vld [vmem:[%s1 + $0x20] sm:$0xff]
    %v48 = vld [vmem:[%s1 + $0x38] sm:$0xff]
    %v49 = vld [vmem:[%s1 + $0x50] sm:$0xff]
    %v50 = vld [vmem:[%s1 + $0x68] sm:$0xff]
    %v51 = vld [vmem:[%s1 + $0x80] sm:$0xff]
    %v52 = vld [vmem:[%s1 + $0x98] sm:$0xff]
    %v53 = vld [vmem:[%s1 + $0xb0] sm:$0xff]
    %v54 = vld [vmem:[%s1 + $0xc8] sm:$0xff]
    %v55 = vld [vmem:[%s1 + $0xe0] sm:$0xff]
    %v56 = vld [vmem:[%s1 + $0xf8] sm:$0xff]
    %v57 = vld [vmem:[%s1 + $0x110] sm:$0xff]
    %v58 = vld [vmem:[%s1 + $0x128] sm:$0xff]
    %v59 = vld [vmem:[%s1 + $0x140] sm:$0xff]
    %v60 = vld [vmem:[%s1 + $0x158] sm:$0xff]
    %v61 = vld [vmem:[%s1 + $0x170] sm:$0xff]
    %v62 = vld [vmem:[%s1 + $0x10] sm:$0xff]
    %v63 = vld [vmem:[%s1 + $0x28] sm:$0xff]
    %v64 = vld [vmem:[%s1 + $0x40] sm:$0xff]
    %v65 = vld [vmem:[%s1 + $0x58] sm:$0xff]
    %v66 = vld [vmem:[%s1 + $0x70] sm:$0xff]
    %v67 = vld [vmem:[%s1 + $0x88] sm:$0xff]
    %v68 = vld [vmem:[%s1 + $0xa0] sm:$0xff]
    %v69 = vld [vmem:[%s1 + $0xb8] sm:$0xff]
    %v70 = vld [vmem:[%s1 + $0xd0] sm:$0xff]
    %v71 = vld [vmem:[%s1 + $0xe8] sm:$0xff]
    %v72 = vld [vmem:[%s1 + $0x100] sm:$0xff]
    %v73 = vld [vmem:[%s1 + $0x118] sm:$0xff]
    %v74 = vld [vmem:[%s1 + $0x130] sm:$0xff]
    %v75 = vld [vmem:[%s1 + $0x148] sm:$0xff]
    %v76 = vld [vmem:[%s1 + $0x160] sm:$0xff]
    %v77 = vld [vmem:[%s1 + $0x178] sm:$0xff]
    %94 = vrot.lane.b32.xlu0 %v62, 120
    %v95 = vpop.permute.xlu0 %94
    %96 = vrot.lane.b32.xlu0 %v63, 120
    %v97 = vpop.permute.xlu0 %96
    %98 = vrot.lane.b32.xlu0 %v64, 120
    %v99 = vpop.permute.xlu0 %98
    %100 = vrot.lane.b32.xlu0 %v65, 120
    %v101 = vpop.permute.xlu0 %100
    %102 = vrot.lane.b32.xlu0 %v66, 120
    %v103 = vpop.permute.xlu0 %102
    %104 = vrot.lane.b32.xlu0 %v67, 120
    %v105 = vpop.permute.xlu0 %104
    %106 = vrot.lane.b32.xlu0 %v68, 120
    %v107 = vpop.permute.xlu0 %106
    %108 = vrot.lane.b32.xlu0 %v69, 120
    %v109 = vpop.permute.xlu0 %108
    %110 = vrot.lane.b32.xlu0 %v70, 120
    %v111 = vpop.permute.xlu0 %110
    %112 = vrot.lane.b32.xlu0 %v71, 120
    %v113 = vpop.permute.xlu0 %112
    %114 = vrot.lane.b32.xlu0 %v72, 120
    %v115 = vpop.permute.xlu0 %114
    %116 = vrot.lane.b32.xlu0 %v73, 120
    %v117 = vpop.permute.xlu0 %116
    %118 = vrot.lane.b32.xlu0 %v74, 120
    %v119 = vpop.permute.xlu0 %118
    %120 = vrot.lane.b32.xlu0 %v75, 120
    %v121 = vpop.permute.xlu0 %120
    %122 = vrot.lane.b32.xlu0 %v76, 120
    %v123 = vpop.permute.xlu0 %122
    %124 = vrot.lane.b32.xlu0 %v77, 120
    %v125 = vpop.permute.xlu0 %124
    %128 = vrot.lane.b32.xlu0 %v12, 24
    %v129 = vpop.permute.xlu0 %128
    %130 = vrot.lane.b32.xlu0 %v13, 24
    %v131 = vpop.permute.xlu0 %130
    %vm134 = vcmask 130048
    %v135 = vsel %vm134, %v95, 0
    %v137 = vsel %vm134, %v97, 0
    %v139 = vsel %vm134, %v99, 0
    %v141 = vsel %vm134, %v101, 0
    %v143 = vsel %vm134, %v103, 0
    %v145 = vsel %vm134, %v105, 0
    %v147 = vsel %vm134, %v107, 0
    %v149 = vsel %vm134, %v109, 0
    %v151 = vsel %vm134, %v111, 0
    %v153 = vsel %vm134, %v113, 0
    %v155 = vsel %vm134, %v115, 0
    %v157 = vsel %vm134, %v117, 0
    %v159 = vsel %vm134, %v119, 0
    %v161 = vsel %vm134, %v121, 0
    %v163 = vsel %vm134, %v123, 0
    %v165 = vsel %vm134, %v125, 0
    %167 = vmatprep.subr.mxu0 0.0
    %168 = vmatpush1.msra.mxu0 %v129
    %169 = vmatprep.subr.mxu0 0.0
    %170 = vmatpush1.msra.mxu0 %v131
    %171 = vmatprep.subr.mxu0 0.0
    %172 = vmatpush1.msra.mxu0 0.0
    %173 = vmatprep.subr.mxu0 0.0
    %174 = vmatpush1.msra.mxu0 0.0
    %175 = vmatprep.subr.mxu0 0.0
    %176 = vmatpush1.msra.mxu0 0.0
    %177 = vmatprep.subr.mxu0 0.0
    %178 = vmatpush1.msra.mxu0 0.0
    %179 = vmatprep.subr.mxu0 0.0
    %180 = vmatpush1.msra.mxu0 0.0
    %181 = vmatprep.subr.mxu0 0.0
    %182 = vmatpush1.msra.mxu0 0.0
    %183 = vmatprep.subr.mxu0 0.0
    %184 = vmatpush1.msra.mxu0 0.0
    %185 = vmatprep.subr.mxu0 0.0
    %186 = vmatpush1.msra.mxu0 0.0
    %187 = vmatprep.subr.mxu0 0.0
    %188 = vmatpush1.msra.mxu0 0.0
    %189 = vmatprep.subr.mxu0 0.0
    %190 = vmatpush1.msra.mxu0 0.0
    %191 = vmatprep.subr.mxu0 0.0
    %192 = vmatpush1.msra.mxu0 0.0
    %193 = vmatprep.subr.mxu0 0.0
    %194 = vmatpush1.msra.mxu0 0.0
    %195 = vmatprep.subr.mxu0 0.0
    %196 = vmatpush1.msra.mxu0 0.0
    %197 = vmatprep.subr.mxu0 0.0
    %198 = vmatpush1.msra.mxu0 0.0
    %199 = vmatprep.subr.mxu0 0.0
    %200 = vmatpush1.msra.mxu0 0.0
    %201 = vmatprep.subr.mxu0 0.0
    %202 = vmatpush1.msra.mxu0 0.0
    %203 = vmatprep.subr.mxu0 0.0
    %204 = vmatpush1.msra.mxu0 0.0
    %205 = vmatprep.subr.mxu0 0.0
    %206 = vmatpush1.msra.mxu0 0.0
    %207 = vmatprep.subr.mxu0 0.0
    %208 = vmatpush1.msra.mxu0 0.0
    %209 = vmatprep.subr.mxu0 0.0
    %210 = vmatpush1.msra.mxu0 0.0
    %211 = vmatprep.subr.mxu0 0.0
    %212 = vmatpush1.msra.mxu0 0.0
    %213 = vmatprep.subr.mxu0 0.0
    %214 = vmatpush1.msra.mxu0 0.0
    %215 = vmatprep.subr.mxu0 0.0
    %216 = vmatpush1.msra.mxu0 0.0
    %217 = vmatprep.subr.mxu0 0.0
    %218 = vmatpush1.msra.mxu0 0.0
    %219 = vmatprep.subr.mxu0 0.0
    %220 = vmatpush1.msra.mxu0 0.0
    %221 = vmatprep.subr.mxu0 0.0
    %222 = vmatpush1.msra.mxu0 0.0
    %223 = vmatprep.subr.mxu0 0.0
    %224 = vmatpush1.msra.mxu0 0.0
    %225 = vmatprep.subr.mxu0 0.0
    %226 = vmatpush1.msra.mxu0 0.0
    %227 = vmatprep.subr.mxu0 0.0
    %228 = vmatpush1.msra.mxu0 0.0
    %229 = vmatprep.subr.mxu0 0.0
    %230 = vmatpush1.msra.mxu0 0.0
    %231 = vmatprep.mubr.f32.mxu0 0.0
    %232 = vmatmul.mubr.f32.gmra.mrb[0].mxu0 %v135
    %v233 = vpop.f32.mrb[0].mxu0
    %v234 = vadd.f32 0.0, %v233
    %v235 = vpop.f32.mrb[0].mxu0
    %236 = vmatprep.mubr.f32.mxu0 0.0
    %237 = vmatmul.mubr.f32.gmra.mrb[0].mxu0 %v137
    %v238 = vpop.f32.mrb[0].mxu0
    %v239 = vadd.f32 0.0, %v238
    %v240 = vpop.f32.mrb[0].mxu0
    %241 = vmatprep.mubr.f32.mxu0 0.0
    %242 = vmatmul.mubr.f32.gmra.mrb[0].mxu0 %v139
    %v243 = vpop.f32.mrb[0].mxu0
    %v244 = vadd.f32 0.0, %v243
    %v245 = vpop.f32.mrb[0].mxu0
    %246 = vmatprep.mubr.f32.mxu0 0.0
    %247 = vmatmul.mubr.f32.gmra.mrb[0].mxu0 %v141
    %v248 = vpop.f32.mrb[0].mxu0
    %v249 = vadd.f32 0.0, %v248
    %v250 = vpop.f32.mrb[0].mxu0
    %251 = vmatprep.mubr.f32.mxu0 0.0
    %252 = vmatmul.mubr.f32.gmra.mrb[0].mxu0 %v143
    %v253 = vpop.f32.mrb[0].mxu0
    %v254 = vadd.f32 0.0, %v253
    %v255 = vpop.f32.mrb[0].mxu0
    %256 = vmatprep.mubr.f32.mxu0 0.0
    %257 = vmatmul.mubr.f32.gmra.mrb[0].mxu0 %v145
    %v258 = vpop.f32.mrb[0].mxu0
    %v259 = vadd.f32 0.0, %v258
    %v260 = vpop.f32.mrb[0].mxu0
    %261 = vmatprep.mubr.f32.mxu0 0.0
    %262 = vmatmul.mubr.f32.gmra.mrb[0].mxu0 %v147
    %v263 = vpop.f32.mrb[0].mxu0
    %v264 = vadd.f32 0.0, %v263
    %v265 = vpop.f32.mrb[0].mxu0
    %266 = vmatprep.mubr.f32.mxu0 0.0
    %267 = vmatmul.mubr.f32.gmra.mrb[0].mxu0 %v149
    %v268 = vpop.f32.mrb[0].mxu0
    %v269 = vadd.f32 0.0, %v268
    %v270 = vpop.f32.mrb[0].mxu0
    %271 = vmatprep.mubr.f32.mxu0 0.0
    %272 = vmatmul.mubr.f32.gmra.mrb[0].mxu0 %v151
    %v273 = vpop.f32.mrb[0].mxu0
    %v274 = vadd.f32 0.0, %v273
    %v275 = vpop.f32.mrb[0].mxu0
    %276 = vmatprep.mubr.f32.mxu0 0.0
    %277 = vmatmul.mubr.f32.gmra.mrb[0].mxu0 %v153
    %v278 = vpop.f32.mrb[0].mxu0
    %v279 = vadd.f32 0.0, %v278
    %v280 = vpop.f32.mrb[0].mxu0
    %281 = vmatprep.mubr.f32.mxu0 0.0
    %282 = vmatmul.mubr.f32.gmra.mrb[0].mxu0 %v155
    %v283 = vpop.f32.mrb[0].mxu0
    %v284 = vadd.f32 0.0, %v283
    %v285 = vpop.f32.mrb[0].mxu0
    %286 = vmatprep.mubr.f32.mxu0 0.0
    %287 = vmatmul.mubr.f32.gmra.mrb[0].mxu0 %v157
    %v288 = vpop.f32.mrb[0].mxu0
    %v289 = vadd.f32 0.0, %v288
    %v290 = vpop.f32.mrb[0].mxu0
    %291 = vmatprep.mubr.f32.mxu0 0.0
    %292 = vmatmul.mubr.f32.gmra.mrb[0].mxu0 %v159
    %v293 = vpop.f32.mrb[0].mxu0
    %v294 = vadd.f32 0.0, %v293
    %v295 = vpop.f32.mrb[0].mxu0
    %296 = vmatprep.mubr.f32.mxu0 0.0
    %297 = vmatmul.mubr.f32.gmra.mrb[0].mxu0 %v161
    %v298 = vpop.f32.mrb[0].mxu0
    %v299 = vadd.f32 0.0, %v298
    %v300 = vpop.f32.mrb[0].mxu0
    %301 = vmatprep.mubr.f32.mxu0 0.0
    %302 = vmatmul.mubr.f32.gmra.mrb[0].mxu0 %v163
    %v303 = vpop.f32.mrb[0].mxu0
    %v304 = vadd.f32 0.0, %v303
    %v305 = vpop.f32.mrb[0].mxu0
    %306 = vmatprep.mubr.f32.mxu0 0.0
    %307 = vmatmul.mubr.f32.gmra.mrb[0].mxu0 %v165
    %v308 = vpop.f32.mrb[0].mxu0
    %v309 = vadd.f32 0.0, %v308
    %v310 = vpop.f32.mrb[0].mxu0
    %311 = vdwg.mxu0
    %v312 = vlaneseq
    %v313 = vshrl.u32 %v312, 7
    %v314 = vsub.s32 0, %v313
    %v315 = vrot.slane %v29, %v314
    %317 = vrot.lane.b32.xlu0 %v315, 12
    %v318 = vpop.permute.xlu0 %317
    %320 = vmatprep.subr.mxu0 0.0
    %321 = vmatpush1.msra.mxu0 %v234
    %322 = vmatprep.subr.mxu0 0.0
    %323 = vmatpush1.msra.mxu0 %v239
    %324 = vmatprep.subr.mxu0 0.0
    %325 = vmatpush1.msra.mxu0 %v244
    %326 = vmatprep.subr.mxu0 0.0
    %327 = vmatpush1.msra.mxu0 %v249
    %328 = vmatprep.subr.mxu0 0.0
    %329 = vmatpush1.msra.mxu0 %v254
    %330 = vmatprep.subr.mxu0 0.0
    %331 = vmatpush1.msra.mxu0 %v259
    %332 = vmatprep.subr.mxu0 0.0
    %333 = vmatpush1.msra.mxu0 %v264
    %334 = vmatprep.subr.mxu0 0.0
    %335 = vmatpush1.msra.mxu0 %v269
    %336 = vmatprep.subr.mxu0 0.0
    %337 = vmatpush1.msra.mxu0 %v274
    %338 = vmatprep.subr.mxu0 0.0
    %339 = vmatpush1.msra.mxu0 %v279
    %340 = vmatprep.subr.mxu0 0.0
    %341 = vmatpush1.msra.mxu0 %v284
    %342 = vmatprep.subr.mxu0 0.0
    %343 = vmatpush1.msra.mxu0 %v289
    %344 = vmatprep.subr.mxu0 0.0
    %345 = vmatpush1.msra.mxu0 %v294
    %346 = vmatprep.subr.mxu0 0.0
    %347 = vmatpush1.msra.mxu0 %v299
    %348 = vmatprep.subr.mxu0 0.0
    %349 = vmatpush1.msra.mxu0 %v304
    %350 = vmatprep.subr.mxu0 0.0
    %351 = vmatpush1.msra.mxu0 %v309
    %352 = vmatprep.subr.mxu0 0.0
    %353 = vmatpush1.msra.mxu0 0.0
    %354 = vmatprep.subr.mxu0 0.0
    %355 = vmatpush1.msra.mxu0 0.0
    %356 = vmatprep.subr.mxu0 0.0
    %357 = vmatpush1.msra.mxu0 0.0
    %358 = vmatprep.subr.mxu0 0.0
    %359 = vmatpush1.msra.mxu0 0.0
    %360 = vmatprep.subr.mxu0 0.0
    %361 = vmatpush1.msra.mxu0 0.0
    %362 = vmatprep.subr.mxu0 0.0
    %363 = vmatpush1.msra.mxu0 0.0
    %364 = vmatprep.subr.mxu0 0.0
    %365 = vmatpush1.msra.mxu0 0.0
    %366 = vmatprep.subr.mxu0 0.0
    %367 = vmatpush1.msra.mxu0 0.0
    %368 = vmatprep.subr.mxu0 0.0
    %369 = vmatpush1.msra.mxu0 0.0
    %370 = vmatprep.subr.mxu0 0.0
    %371 = vmatpush1.msra.mxu0 0.0
    %372 = vmatprep.subr.mxu0 0.0
    %373 = vmatpush1.msra.mxu0 0.0
    %374 = vmatprep.subr.mxu0 0.0
    %375 = vmatpush1.msra.mxu0 0.0
    %376 = vmatprep.subr.mxu0 0.0
    %377 = vmatpush1.msra.mxu0 0.0
    %378 = vmatprep.subr.mxu0 0.0
    %379 = vmatpush1.msra.mxu0 0.0
    %380 = vmatprep.subr.mxu0 0.0
    %381 = vmatpush1.msra.mxu0 0.0
    %382 = vmatprep.subr.mxu0 0.0
    %383 = vmatpush1.msra.mxu0 0.0
    %384 = vmatprep.mubr.f32.mxu0 0.0
    %385 = vmatmul.mubr.f32.gmra.mrb[0].mxu0 %v46
    %v386 = vpop.f32.mrb[0].mxu0
    %v387 = vadd.f32 %v318, %v386
    %v388 = vpop.f32.mrb[0].mxu0
    %389 = vmatprep.mubr.f32.mxu0 0.0
    %390 = vmatmul.mubr.f32.gmra.mrb[0].mxu0 %v47
    %v391 = vpop.f32.mrb[0].mxu0
    %v392 = vadd.f32 %v318, %v391
    %v393 = vpop.f32.mrb[0].mxu0
    %394 = vmatprep.mubr.f32.mxu0 0.0
    %395 = vmatmul.mubr.f32.gmra.mrb[0].mxu0 %v48
    %v396 = vpop.f32.mrb[0].mxu0
    %v397 = vadd.f32 %v318, %v396
    %v398 = vpop.f32.mrb[0].mxu0
    %399 = vmatprep.mubr.f32.mxu0 0.0
    %400 = vmatmul.mubr.f32.gmra.mrb[0].mxu0 %v49
    %v401 = vpop.f32.mrb[0].mxu0
    %v402 = vadd.f32 %v318, %v401
    %v403 = vpop.f32.mrb[0].mxu0
    %404 = vmatprep.mubr.f32.mxu0 0.0
    %405 = vmatmul.mubr.f32.gmra.mrb[0].mxu0 %v50
    %v406 = vpop.f32.mrb[0].mxu0
    %v407 = vadd.f32 %v318, %v406
    %v408 = vpop.f32.mrb[0].mxu0
    %409 = vmatprep.mubr.f32.mxu0 0.0
    %410 = vmatmul.mubr.f32.gmra.mrb[0].mxu0 %v51
    %v411 = vpop.f32.mrb[0].mxu0
    %v412 = vadd.f32 %v318, %v411
    %v413 = vpop.f32.mrb[0].mxu0
    %414 = vmatprep.mubr.f32.mxu0 0.0
    %415 = vmatmul.mubr.f32.gmra.mrb[0].mxu0 %v52
    %v416 = vpop.f32.mrb[0].mxu0
    %v417 = vadd.f32 %v318, %v416
    %v418 = vpop.f32.mrb[0].mxu0
    %419 = vmatprep.mubr.f32.mxu0 0.0
    %420 = vmatmul.mubr.f32.gmra.mrb[0].mxu0 %v53
    %v421 = vpop.f32.mrb[0].mxu0
    %v422 = vadd.f32 %v318, %v421
    %v423 = vpop.f32.mrb[0].mxu0
    %424 = vmatprep.mubr.f32.mxu0 0.0
    %425 = vmatmul.mubr.f32.gmra.mrb[0].mxu0 %v54
    %v426 = vpop.f32.mrb[0].mxu0
    %v427 = vadd.f32 %v318, %v426
    %v428 = vpop.f32.mrb[0].mxu0
    %429 = vmatprep.mubr.f32.mxu0 0.0
    %430 = vmatmul.mubr.f32.gmra.mrb[0].mxu0 %v55
    %v431 = vpop.f32.mrb[0].mxu0
    %v432 = vadd.f32 %v318, %v431
    %v433 = vpop.f32.mrb[0].mxu0
    %434 = vmatprep.mubr.f32.mxu0 0.0
    %435 = vmatmul.mubr.f32.gmra.mrb[0].mxu0 %v56
    %v436 = vpop.f32.mrb[0].mxu0
    %v437 = vadd.f32 %v318, %v436
    %v438 = vpop.f32.mrb[0].mxu0
    %439 = vmatprep.mubr.f32.mxu0 0.0
    %440 = vmatmul.mubr.f32.gmra.mrb[0].mxu0 %v57
    %v441 = vpop.f32.mrb[0].mxu0
    %v442 = vadd.f32 %v318, %v441
    %v443 = vpop.f32.mrb[0].mxu0
    %444 = vmatprep.mubr.f32.mxu0 0.0
    %445 = vmatmul.mubr.f32.gmra.mrb[0].mxu0 %v58
    %v446 = vpop.f32.mrb[0].mxu0
    %v447 = vadd.f32 %v318, %v446
    %v448 = vpop.f32.mrb[0].mxu0
    %449 = vmatprep.mubr.f32.mxu0 0.0
    %450 = vmatmul.mubr.f32.gmra.mrb[0].mxu0 %v59
    %v451 = vpop.f32.mrb[0].mxu0
    %v452 = vadd.f32 %v318, %v451
    %v453 = vpop.f32.mrb[0].mxu0
    %454 = vmatprep.mubr.f32.mxu0 0.0
    %455 = vmatmul.mubr.f32.gmra.mrb[0].mxu0 %v60
    %v456 = vpop.f32.mrb[0].mxu0
    %v457 = vadd.f32 %v318, %v456
    %v458 = vpop.f32.mrb[0].mxu0
    %459 = vmatprep.mubr.f32.mxu0 0.0
    %460 = vmatmul.mubr.f32.gmra.mrb[0].mxu0 %v61
    %v461 = vpop.f32.mrb[0].mxu0
    %v462 = vadd.f32 %v318, %v461
    %v463 = vpop.f32.mrb[0].mxu0
    %464 = vdwg.mxu0
    %vm465 = vcmask 31744
    %v466 = vsel %vm465, %v387, -inf
    %467 = vmax.xlane.f32.xlu0 %v466
    %v468 = vpop.xlane.xlu0 %467
    %v469 = vsel %vm465, %v392, -inf
    %470 = vmax.xlane.f32.xlu0 %v469
    %v471 = vpop.xlane.xlu0 %470
    %v472 = vsel %vm465, %v397, -inf
    %473 = vmax.xlane.f32.xlu0 %v472
    %v474 = vpop.xlane.xlu0 %473
    %v475 = vsel %vm465, %v402, -inf
    %476 = vmax.xlane.f32.xlu0 %v475
    %v477 = vpop.xlane.xlu0 %476
    %v478 = vsel %vm465, %v407, -inf
    %479 = vmax.xlane.f32.xlu0 %v478
    %v480 = vpop.xlane.xlu0 %479
    %v481 = vsel %vm465, %v412, -inf
    %482 = vmax.xlane.f32.xlu0 %v481
    %v483 = vpop.xlane.xlu0 %482
    %v484 = vsel %vm465, %v417, -inf
    %485 = vmax.xlane.f32.xlu0 %v484
    %v486 = vpop.xlane.xlu0 %485
    %v487 = vsel %vm465, %v422, -inf
    %488 = vmax.xlane.f32.xlu0 %v487
    %v489 = vpop.xlane.xlu0 %488
    %v490 = vsel %vm465, %v427, -inf
    %491 = vmax.xlane.f32.xlu0 %v490
    %v492 = vpop.xlane.xlu0 %491
    %v493 = vsel %vm465, %v432, -inf
    %494 = vmax.xlane.f32.xlu0 %v493
    %v495 = vpop.xlane.xlu0 %494
    %v496 = vsel %vm465, %v437, -inf
    %497 = vmax.xlane.f32.xlu0 %v496
    %v498 = vpop.xlane.xlu0 %497
    %v499 = vsel %vm465, %v442, -inf
    %500 = vmax.xlane.f32.xlu0 %v499
    %v501 = vpop.xlane.xlu0 %500
    %v502 = vsel %vm465, %v447, -inf
    %503 = vmax.xlane.f32.xlu0 %v502
    %v504 = vpop.xlane.xlu0 %503
    %v505 = vsel %vm465, %v452, -inf
    %506 = vmax.xlane.f32.xlu0 %v505
    %v507 = vpop.xlane.xlu0 %506
    %v508 = vsel %vm465, %v457, -inf
    %509 = vmax.xlane.f32.xlu0 %v508
    %v510 = vpop.xlane.xlu0 %509
    %v511 = vsel %vm465, %v462, -inf
    %512 = vmax.xlane.f32.xlu0 %v511
    %v513 = vpop.xlane.xlu0 %512
    %v514 = vmax.f32 %v468, 0.0
    %v515 = vmax.f32 %v471, 0.0
    %v516 = vmax.f32 %v474, 0.0
    %v517 = vmax.f32 %v477, 0.0
    %v518 = vmax.f32 %v480, 0.0
    %v519 = vmax.f32 %v483, 0.0
    %v520 = vmax.f32 %v486, 0.0
    %v521 = vmax.f32 %v489, 0.0
    %v522 = vmax.f32 %v492, 0.0
    %v523 = vmax.f32 %v495, 0.0
    %v524 = vmax.f32 %v498, 0.0
    %v525 = vmax.f32 %v501, 0.0
    %v526 = vmax.f32 %v504, 0.0
    %v527 = vmax.f32 %v507, 0.0
    %v528 = vmax.f32 %v510, 0.0
    %v529 = vmax.f32 %v513, 0.0
    %v530 = vsub.f32 %v387, %v514
    %v531 = vsub.f32 %v392, %v515
    %v532 = vsub.f32 %v397, %v516
    %v533 = vsub.f32 %v402, %v517
    %v534 = vsub.f32 %v407, %v518
    %v535 = vsub.f32 %v412, %v519
    %v536 = vsub.f32 %v417, %v520
    %v537 = vsub.f32 %v422, %v521
    %v538 = vsub.f32 %v427, %v522
    %v539 = vsub.f32 %v432, %v523
    %v540 = vsub.f32 %v437, %v524
    %v541 = vsub.f32 %v442, %v525
    %v542 = vsub.f32 %v447, %v526
    %v543 = vsub.f32 %v452, %v527
    %v544 = vsub.f32 %v457, %v528
    %v545 = vsub.f32 %v462, %v529
    %v546 = vmul.f32 %v530, 1.442695
    %v547 = vpow.pop %v546
    %v548 = vmul.f32 %v531, 1.442695
    %v549 = vpow.pop %v548
    %v550 = vmul.f32 %v532, 1.442695
    %v551 = vpow.pop %v550
    %v552 = vmul.f32 %v533, 1.442695
    %v553 = vpow.pop %v552
    %v554 = vmul.f32 %v534, 1.442695
    %v555 = vpow.pop %v554
    %v556 = vmul.f32 %v535, 1.442695
    %v557 = vpow.pop %v556
    %v558 = vmul.f32 %v536, 1.442695
    %v559 = vpow.pop %v558
    %v560 = vmul.f32 %v537, 1.442695
    %v561 = vpow.pop %v560
    %v562 = vmul.f32 %v538, 1.442695
    %v563 = vpow.pop %v562
    %v564 = vmul.f32 %v539, 1.442695
    %v565 = vpow.pop %v564
    %v566 = vmul.f32 %v540, 1.442695
    %v567 = vpow.pop %v566
    %v568 = vmul.f32 %v541, 1.442695
    %v569 = vpow.pop %v568
    %v570 = vmul.f32 %v542, 1.442695
    %v571 = vpow.pop %v570
    %v572 = vmul.f32 %v543, 1.442695
    %v573 = vpow.pop %v572
    %v574 = vmul.f32 %v544, 1.442695
    %v575 = vpow.pop %v574
    %v576 = vmul.f32 %v545, 1.442695
    %v577 = vpow.pop %v576
    %v578 = vsel %vm465, %v547, 0.0
    %579 = vadd.xlane.f32.xlu0 %v578
    %v580 = vpop.xlane.xlu0 %579
    %v581 = vsel %vm465, %v549, 0.0
    %582 = vadd.xlane.f32.xlu0 %v581
    %v583 = vpop.xlane.xlu0 %582
    %v584 = vsel %vm465, %v551, 0.0
    %585 = vadd.xlane.f32.xlu0 %v584
    %v586 = vpop.xlane.xlu0 %585
    %v587 = vsel %vm465, %v553, 0.0
    %588 = vadd.xlane.f32.xlu0 %v587
    %v589 = vpop.xlane.xlu0 %588
    %v590 = vsel %vm465, %v555, 0.0
    %591 = vadd.xlane.f32.xlu0 %v590
    %v592 = vpop.xlane.xlu0 %591
    %v593 = vsel %vm465, %v557, 0.0
    %594 = vadd.xlane.f32.xlu0 %v593
    %v595 = vpop.xlane.xlu0 %594
    %v596 = vsel %vm465, %v559, 0.0
    %597 = vadd.xlane.f32.xlu0 %v596
    %v598 = vpop.xlane.xlu0 %597
    %v599 = vsel %vm465, %v561, 0.0
    %600 = vadd.xlane.f32.xlu0 %v599
    %v601 = vpop.xlane.xlu0 %600
    %v602 = vsel %vm465, %v563, 0.0
    %603 = vadd.xlane.f32.xlu0 %v602
    %v604 = vpop.xlane.xlu0 %603
    %v605 = vsel %vm465, %v565, 0.0
    %606 = vadd.xlane.f32.xlu0 %v605
    %v607 = vpop.xlane.xlu0 %606
    %v608 = vsel %vm465, %v567, 0.0
    %609 = vadd.xlane.f32.xlu0 %v608
    %v610 = vpop.xlane.xlu0 %609
    %v611 = vsel %vm465, %v569, 0.0
    %612 = vadd.xlane.f32.xlu0 %v611
    %v613 = vpop.xlane.xlu0 %612
    %v614 = vsel %vm465, %v571, 0.0
    %615 = vadd.xlane.f32.xlu0 %v614
    %v616 = vpop.xlane.xlu0 %615
    %v617 = vsel %vm465, %v573, 0.0
    %618 = vadd.xlane.f32.xlu0 %v617
    %v619 = vpop.xlane.xlu0 %618
    %v620 = vsel %vm465, %v575, 0.0
    %621 = vadd.xlane.f32.xlu0 %v620
    %v622 = vpop.xlane.xlu0 %621
    %v623 = vsel %vm465, %v577, 0.0
    %624 = vadd.xlane.f32.xlu0 %v623
    %v625 = vpop.xlane.xlu0 %624
    %v626 = vsub.f32 0.0, %v514
    %v627 = vsub.f32 0.0, %v515
    %v628 = vsub.f32 0.0, %v516
    %v629 = vsub.f32 0.0, %v517
    %v630 = vsub.f32 0.0, %v518
    %v631 = vsub.f32 0.0, %v519
    %v632 = vsub.f32 0.0, %v520
    %v633 = vsub.f32 0.0, %v521
    %v634 = vsub.f32 0.0, %v522
    %v635 = vsub.f32 0.0, %v523
    %v636 = vsub.f32 0.0, %v524
    %v637 = vsub.f32 0.0, %v525
    %v638 = vsub.f32 0.0, %v526
    %v639 = vsub.f32 0.0, %v527
    %v640 = vsub.f32 0.0, %v528
    %v641 = vsub.f32 0.0, %v529
    %v642 = vmul.f32 %v626, 1.442695
    %v643 = vpow.pop %v642
    %v644 = vmul.f32 %v627, 1.442695
    %v645 = vpow.pop %v644
    %v646 = vmul.f32 %v628, 1.442695
    %v647 = vpow.pop %v646
    %v648 = vmul.f32 %v629, 1.442695
    %v649 = vpow.pop %v648
    %v650 = vmul.f32 %v630, 1.442695
    %v651 = vpow.pop %v650
    %v652 = vmul.f32 %v631, 1.442695
    %v653 = vpow.pop %v652
    %v654 = vmul.f32 %v632, 1.442695
    %v655 = vpow.pop %v654
    %v656 = vmul.f32 %v633, 1.442695
    %v657 = vpow.pop %v656
    %v658 = vmul.f32 %v634, 1.442695
    %v659 = vpow.pop %v658
    %v660 = vmul.f32 %v635, 1.442695
    %v661 = vpow.pop %v660
    %v662 = vmul.f32 %v636, 1.442695
    %v663 = vpow.pop %v662
    %v664 = vmul.f32 %v637, 1.442695
    %v665 = vpow.pop %v664
    %v666 = vmul.f32 %v638, 1.442695
    %v667 = vpow.pop %v666
    %v668 = vmul.f32 %v639, 1.442695
    %v669 = vpow.pop %v668
    %v670 = vmul.f32 %v640, 1.442695
    %v671 = vpow.pop %v670
    %v672 = vmul.f32 %v641, 1.442695
    %v673 = vpow.pop %v672
    %v674 = vmul.f32 %v643, 4.0
    %v675 = vmul.f32 %v645, 4.0
    %v676 = vmul.f32 %v647, 4.0
    %v677 = vmul.f32 %v649, 4.0
    %v678 = vmul.f32 %v651, 4.0
    %v679 = vmul.f32 %v653, 4.0
    %v680 = vmul.f32 %v655, 4.0
    %v681 = vmul.f32 %v657, 4.0
    %v682 = vmul.f32 %v659, 4.0
    %v683 = vmul.f32 %v661, 4.0
    %v684 = vmul.f32 %v663, 4.0
    %v685 = vmul.f32 %v665, 4.0
    %v686 = vmul.f32 %v667, 4.0
    %v687 = vmul.f32 %v669, 4.0
    %v688 = vmul.f32 %v671, 4.0
    %v689 = vmul.f32 %v673, 4.0
    %v690 = vadd.f32 %v580, %v674
    %v691 = vadd.f32 %v583, %v675
    %v692 = vadd.f32 %v586, %v676
    %v693 = vadd.f32 %v589, %v677
    %v694 = vadd.f32 %v592, %v678
    %v695 = vadd.f32 %v595, %v679
    %v696 = vadd.f32 %v598, %v680
    %v697 = vadd.f32 %v601, %v681
    %v698 = vadd.f32 %v604, %v682
    %v699 = vadd.f32 %v607, %v683
    %v700 = vadd.f32 %v610, %v684
    %v701 = vadd.f32 %v613, %v685
    %v702 = vadd.f32 %v616, %v686
    %v703 = vadd.f32 %v619, %v687
    %v704 = vadd.f32 %v622, %v688
    %v705 = vadd.f32 %v625, %v689
    %v706 = vmul.f32 %v690, 1e-13
    %v707 = vmul.f32 %v691, 1e-13
    %v708 = vmul.f32 %v692, 1e-13
    %v709 = vmul.f32 %v693, 1e-13
    %v710 = vmul.f32 %v694, 1e-13
    %v711 = vmul.f32 %v695, 1e-13
    %v712 = vmul.f32 %v696, 1e-13
    %v713 = vmul.f32 %v697, 1e-13
    %v714 = vmul.f32 %v698, 1e-13
    %v715 = vmul.f32 %v699, 1e-13
    %v716 = vmul.f32 %v700, 1e-13
    %v717 = vmul.f32 %v701, 1e-13
    %v718 = vmul.f32 %v702, 1e-13
    %v719 = vmul.f32 %v703, 1e-13
    %v720 = vmul.f32 %v704, 1e-13
    %v721 = vmul.f32 %v705, 1e-13
    %v722 = vadd.f32 %v580, %v706
    %v723 = vadd.f32 %v583, %v707
    %v724 = vadd.f32 %v586, %v708
    %v725 = vadd.f32 %v589, %v709
    %v726 = vadd.f32 %v592, %v710
    %v727 = vadd.f32 %v595, %v711
    %v728 = vadd.f32 %v598, %v712
    %v729 = vadd.f32 %v601, %v713
    %v730 = vadd.f32 %v604, %v714
    %v731 = vadd.f32 %v607, %v715
    %v732 = vadd.f32 %v610, %v716
    %v733 = vadd.f32 %v613, %v717
    %v734 = vadd.f32 %v616, %v718
    %v735 = vadd.f32 %v619, %v719
    %v736 = vadd.f32 %v622, %v720
    %v737 = vadd.f32 %v625, %v721
    %v738 = vrcp.pop %v722
    %v739 = vmul.f32 %v547, %v738
    %v740 = vrcp.pop %v723
    %v741 = vmul.f32 %v549, %v740
    %v742 = vrcp.pop %v724
    %v743 = vmul.f32 %v551, %v742
    %v744 = vrcp.pop %v725
    %v745 = vmul.f32 %v553, %v744
    %v746 = vrcp.pop %v726
    %v747 = vmul.f32 %v555, %v746
    %v748 = vrcp.pop %v727
    %v749 = vmul.f32 %v557, %v748
    %v750 = vrcp.pop %v728
    %v751 = vmul.f32 %v559, %v750
    %v752 = vrcp.pop %v729
    %v753 = vmul.f32 %v561, %v752
    %v754 = vrcp.pop %v730
    %v755 = vmul.f32 %v563, %v754
    %v756 = vrcp.pop %v731
    %v757 = vmul.f32 %v565, %v756
    %v758 = vrcp.pop %v732
    %v759 = vmul.f32 %v567, %v758
    %v760 = vrcp.pop %v733
    %v761 = vmul.f32 %v569, %v760
    %v762 = vrcp.pop %v734
    %v763 = vmul.f32 %v571, %v762
    %v764 = vrcp.pop %v735
    %v765 = vmul.f32 %v573, %v764
    %v766 = vrcp.pop %v736
    %v767 = vmul.f32 %v575, %v766
    %v768 = vrcp.pop %v737
    %v769 = vmul.f32 %v577, %v768
    %771 = vrot.lane.b32.xlu0 %v28, 96
    %v772 = vpop.permute.xlu0 %771
    %v774 = vsel %vm465, %v739, 0
    %v777 = vsel %vm465, %v741, 0
    %v780 = vsel %vm465, %v743, 0
    %v783 = vsel %vm465, %v745, 0
    %v786 = vsel %vm465, %v747, 0
    %v789 = vsel %vm465, %v749, 0
    %v792 = vsel %vm465, %v751, 0
    %v795 = vsel %vm465, %v753, 0
    %v798 = vsel %vm465, %v755, 0
    %v801 = vsel %vm465, %v757, 0
    %v804 = vsel %vm465, %v759, 0
    %v807 = vsel %vm465, %v761, 0
    %v810 = vsel %vm465, %v763, 0
    %v813 = vsel %vm465, %v765, 0
    %v816 = vsel %vm465, %v767, 0
    %v819 = vsel %vm465, %v769, 0
    %vm821 = vcmask 1043456
    %v822 = vsel %vm821, %v772, 0
    %824 = vmatprep.subr.mxu0 0.0
    %825 = vmatpush1.msra.mxu0 %v822
    %826 = vmatprep.subr.mxu0 0.0
    %827 = vmatpush1.msra.mxu0 0.0
    %828 = vmatprep.subr.mxu0 0.0
    %829 = vmatpush1.msra.mxu0 0.0
    %830 = vmatprep.subr.mxu0 0.0
    %831 = vmatpush1.msra.mxu0 0.0
    %832 = vmatprep.subr.mxu0 0.0
    %833 = vmatpush1.msra.mxu0 0.0
    %834 = vmatprep.subr.mxu0 0.0
    %835 = vmatpush1.msra.mxu0 0.0
    %836 = vmatprep.subr.mxu0 0.0
    %837 = vmatpush1.msra.mxu0 0.0
    %838 = vmatprep.subr.mxu0 0.0
    %839 = vmatpush1.msra.mxu0 0.0
    %840 = vmatprep.subr.mxu0 0.0
    %841 = vmatpush1.msra.mxu0 0.0
    %842 = vmatprep.subr.mxu0 0.0
    %843 = vmatpush1.msra.mxu0 0.0
    %844 = vmatprep.subr.mxu0 0.0
    %845 = vmatpush1.msra.mxu0 0.0
    %846 = vmatprep.subr.mxu0 0.0
    %847 = vmatpush1.msra.mxu0 0.0
    %848 = vmatprep.subr.mxu0 0.0
    %849 = vmatpush1.msra.mxu0 0.0
    %850 = vmatprep.subr.mxu0 0.0
    %851 = vmatpush1.msra.mxu0 0.0
    %852 = vmatprep.subr.mxu0 0.0
    %853 = vmatpush1.msra.mxu0 0.0
    %854 = vmatprep.subr.mxu0 0.0
    %855 = vmatpush1.msra.mxu0 0.0
    %856 = vmatprep.subr.mxu0 0.0
    %857 = vmatpush1.msra.mxu0 0.0
    %858 = vmatprep.subr.mxu0 0.0
    %859 = vmatpush1.msra.mxu0 0.0
    %860 = vmatprep.subr.mxu0 0.0
    %861 = vmatpush1.msra.mxu0 0.0
    %862 = vmatprep.subr.mxu0 0.0
    %863 = vmatpush1.msra.mxu0 0.0
    %864 = vmatprep.subr.mxu0 0.0
    %865 = vmatpush1.msra.mxu0 0.0
    %866 = vmatprep.subr.mxu0 0.0
    %867 = vmatpush1.msra.mxu0 0.0
    %868 = vmatprep.subr.mxu0 0.0
    %869 = vmatpush1.msra.mxu0 0.0
    %870 = vmatprep.subr.mxu0 0.0
    %871 = vmatpush1.msra.mxu0 0.0
    %872 = vmatprep.subr.mxu0 0.0
    %873 = vmatpush1.msra.mxu0 0.0
    %874 = vmatprep.subr.mxu0 0.0
    %875 = vmatpush1.msra.mxu0 0.0
    %876 = vmatprep.subr.mxu0 0.0
    %877 = vmatpush1.msra.mxu0 0.0
    %878 = vmatprep.subr.mxu0 0.0
    %879 = vmatpush1.msra.mxu0 0.0
    %880 = vmatprep.subr.mxu0 0.0
    %881 = vmatpush1.msra.mxu0 0.0
    %882 = vmatprep.subr.mxu0 0.0
    %883 = vmatpush1.msra.mxu0 0.0
    %884 = vmatprep.subr.mxu0 0.0
    %885 = vmatpush1.msra.mxu0 0.0
    %886 = vmatprep.subr.mxu0 0.0
    %887 = vmatpush1.msra.mxu0 0.0
    %888 = vmatprep.mubr.f32.mxu0 0.0
    %889 = vmatmul.mubr.f32.gmra.mrb[0].mxu0 %v774
    %v890 = vpop.f32.mrb[0].mxu0
    %v891 = vadd.f32 0.0, %v890
    %v892 = vpop.f32.mrb[0].mxu0
    %893 = vmatprep.mubr.f32.mxu0 0.0
    %894 = vmatmul.mubr.f32.gmra.mrb[0].mxu0 %v777
    %v895 = vpop.f32.mrb[0].mxu0
    %v896 = vadd.f32 0.0, %v895
    %v897 = vpop.f32.mrb[0].mxu0
    %898 = vmatprep.mubr.f32.mxu0 0.0
    %899 = vmatmul.mubr.f32.gmra.mrb[0].mxu0 %v780
    %v900 = vpop.f32.mrb[0].mxu0
    %v901 = vadd.f32 0.0, %v900
    %v902 = vpop.f32.mrb[0].mxu0
    %903 = vmatprep.mubr.f32.mxu0 0.0
    %904 = vmatmul.mubr.f32.gmra.mrb[0].mxu0 %v783
    %v905 = vpop.f32.mrb[0].mxu0
    %v906 = vadd.f32 0.0, %v905
    %v907 = vpop.f32.mrb[0].mxu0
    %908 = vmatprep.mubr.f32.mxu0 0.0
    %909 = vmatmul.mubr.f32.gmra.mrb[0].mxu0 %v786
    %v910 = vpop.f32.mrb[0].mxu0
    %v911 = vadd.f32 0.0, %v910
    %v912 = vpop.f32.mrb[0].mxu0
    %913 = vmatprep.mubr.f32.mxu0 0.0
    %914 = vmatmul.mubr.f32.gmra.mrb[0].mxu0 %v789
    %v915 = vpop.f32.mrb[0].mxu0
    %v916 = vadd.f32 0.0, %v915
    %v917 = vpop.f32.mrb[0].mxu0
    %918 = vmatprep.mubr.f32.mxu0 0.0
    %919 = vmatmul.mubr.f32.gmra.mrb[0].mxu0 %v792
    %v920 = vpop.f32.mrb[0].mxu0
    %v921 = vadd.f32 0.0, %v920
    %v922 = vpop.f32.mrb[0].mxu0
    %923 = vmatprep.mubr.f32.mxu0 0.0
    %924 = vmatmul.mubr.f32.gmra.mrb[0].mxu0 %v795
    %v925 = vpop.f32.mrb[0].mxu0
    %v926 = vadd.f32 0.0, %v925
    %v927 = vpop.f32.mrb[0].mxu0
    %928 = vmatprep.mubr.f32.mxu0 0.0
    %929 = vmatmul.mubr.f32.gmra.mrb[0].mxu0 %v798
    %v930 = vpop.f32.mrb[0].mxu0
    %v931 = vadd.f32 0.0, %v930
    %v932 = vpop.f32.mrb[0].mxu0
    %933 = vmatprep.mubr.f32.mxu0 0.0
    %934 = vmatmul.mubr.f32.gmra.mrb[0].mxu0 %v801
    %v935 = vpop.f32.mrb[0].mxu0
    %v936 = vadd.f32 0.0, %v935
    %v937 = vpop.f32.mrb[0].mxu0
    %938 = vmatprep.mubr.f32.mxu0 0.0
    %939 = vmatmul.mubr.f32.gmra.mrb[0].mxu0 %v804
    %v940 = vpop.f32.mrb[0].mxu0
    %v941 = vadd.f32 0.0, %v940
    %v942 = vpop.f32.mrb[0].mxu0
    %943 = vmatprep.mubr.f32.mxu0 0.0
    %944 = vmatmul.mubr.f32.gmra.mrb[0].mxu0 %v807
    %v945 = vpop.f32.mrb[0].mxu0
    %v946 = vadd.f32 0.0, %v945
    %v947 = vpop.f32.mrb[0].mxu0
    %948 = vmatprep.mubr.f32.mxu0 0.0
    %949 = vmatmul.mubr.f32.gmra.mrb[0].mxu0 %v810
    %v950 = vpop.f32.mrb[0].mxu0
    %v951 = vadd.f32 0.0, %v950
    %v952 = vpop.f32.mrb[0].mxu0
    %953 = vmatprep.mubr.f32.mxu0 0.0
    %954 = vmatmul.mubr.f32.gmra.mrb[0].mxu0 %v813
    %v955 = vpop.f32.mrb[0].mxu0
    %v956 = vadd.f32 0.0, %v955
    %v957 = vpop.f32.mrb[0].mxu0
    %958 = vmatprep.mubr.f32.mxu0 0.0
    %959 = vmatmul.mubr.f32.gmra.mrb[0].mxu0 %v816
    %v960 = vpop.f32.mrb[0].mxu0
    %v961 = vadd.f32 0.0, %v960
    %v962 = vpop.f32.mrb[0].mxu0
    %963 = vmatprep.mubr.f32.mxu0 0.0
    %964 = vmatmul.mubr.f32.gmra.mrb[0].mxu0 %v819
    %v965 = vpop.f32.mrb[0].mxu0
    %v966 = vadd.f32 0.0, %v965
    %v967 = vpop.f32.mrb[0].mxu0
    %968 = vdwg.mxu0
    %v969 = vmul.f32 %v891, %v12
    %v970 = vmul.f32 %v896, %v13
    %v971 = vmul.f32 %v901, %v14
    %v972 = vmul.f32 %v906, %v15
    %v973 = vmul.f32 %v911, %v16
    %v974 = vmul.f32 %v916, %v17
    %v975 = vmul.f32 %v921, %v18
    %v976 = vmul.f32 %v926, %v19
    %v977 = vmul.f32 %v931, %v20
    %v978 = vmul.f32 %v936, %v21
    %v979 = vmul.f32 %v941, %v22
    %v980 = vmul.f32 %v946, %v23
    %v981 = vmul.f32 %v951, %v24
    %v982 = vmul.f32 %v956, %v25
    %v983 = vmul.f32 %v961, %v26
    %v984 = vmul.f32 %v966, %v27
    %985 = vadd.xlane.f32.xlu0 %v30
    %v986 = vpop.xlane.xlu0 %985
    %987 = vadd.xlane.f32.xlu0 %v31
    %v988 = vpop.xlane.xlu0 %987
    %989 = vadd.xlane.f32.xlu0 %v32
    %v990 = vpop.xlane.xlu0 %989
    %991 = vadd.xlane.f32.xlu0 %v33
    %v992 = vpop.xlane.xlu0 %991
    %993 = vadd.xlane.f32.xlu0 %v34
    %v994 = vpop.xlane.xlu0 %993
    %995 = vadd.xlane.f32.xlu0 %v35
    %v996 = vpop.xlane.xlu0 %995
    %997 = vadd.xlane.f32.xlu0 %v36
    %v998 = vpop.xlane.xlu0 %997
    %999 = vadd.xlane.f32.xlu0 %v37
    %v1000 = vpop.xlane.xlu0 %999
    %1001 = vadd.xlane.f32.xlu0 %v38
    %v1002 = vpop.xlane.xlu0 %1001
    %1003 = vadd.xlane.f32.xlu0 %v39
    %v1004 = vpop.xlane.xlu0 %1003
    %1005 = vadd.xlane.f32.xlu0 %v40
    %v1006 = vpop.xlane.xlu0 %1005
    %1007 = vadd.xlane.f32.xlu0 %v41
    %v1008 = vpop.xlane.xlu0 %1007
    %1009 = vadd.xlane.f32.xlu0 %v42
    %v1010 = vpop.xlane.xlu0 %1009
    %1011 = vadd.xlane.f32.xlu0 %v43
    %v1012 = vpop.xlane.xlu0 %1011
    %1013 = vadd.xlane.f32.xlu0 %v44
    %v1014 = vpop.xlane.xlu0 %1013
    %1015 = vadd.xlane.f32.xlu0 %v45
    %v1016 = vpop.xlane.xlu0 %1015
    %1033 = vrot.lane.b32.xlu0 %v969, 8
    %v1034 = vpop.permute.xlu0 %1033
    %1035 = vrot.lane.b32.xlu0 %v970, 8
    %v1036 = vpop.permute.xlu0 %1035
    %1037 = vrot.lane.b32.xlu0 %v971, 8
    %v1038 = vpop.permute.xlu0 %1037
    %1039 = vrot.lane.b32.xlu0 %v972, 8
    %v1040 = vpop.permute.xlu0 %1039
    %1041 = vrot.lane.b32.xlu0 %v973, 8
    %v1042 = vpop.permute.xlu0 %1041
    %1043 = vrot.lane.b32.xlu0 %v974, 8
    %v1044 = vpop.permute.xlu0 %1043
    %1045 = vrot.lane.b32.xlu0 %v975, 8
    %v1046 = vpop.permute.xlu0 %1045
    %1047 = vrot.lane.b32.xlu0 %v976, 8
    %v1048 = vpop.permute.xlu0 %1047
    %1049 = vrot.lane.b32.xlu0 %v977, 8
    %v1050 = vpop.permute.xlu0 %1049
    %1051 = vrot.lane.b32.xlu0 %v978, 8
    %v1052 = vpop.permute.xlu0 %1051
    %1053 = vrot.lane.b32.xlu0 %v979, 8
    %v1054 = vpop.permute.xlu0 %1053
    %1055 = vrot.lane.b32.xlu0 %v980, 8
    %v1056 = vpop.permute.xlu0 %1055
    %1057 = vrot.lane.b32.xlu0 %v981, 8
    %v1058 = vpop.permute.xlu0 %1057
    %1059 = vrot.lane.b32.xlu0 %v982, 8
    %v1060 = vpop.permute.xlu0 %1059
    %1061 = vrot.lane.b32.xlu0 %v983, 8
    %v1062 = vpop.permute.xlu0 %1061
    %1063 = vrot.lane.b32.xlu0 %v984, 8
    %v1064 = vpop.permute.xlu0 %1063
    %vm1081 = vcmask 64512
    %v1082 = vsel %vm1081, %v62, %v1034
    %v1083 = vsel %vm1081, %v63, %v1036
    %v1084 = vsel %vm1081, %v64, %v1038
    %v1085 = vsel %vm1081, %v65, %v1040
    %v1086 = vsel %vm1081, %v66, %v1042
    %v1087 = vsel %vm1081, %v67, %v1044
    %v1088 = vsel %vm1081, %v68, %v1046
    %v1089 = vsel %vm1081, %v69, %v1048
    %v1090 = vsel %vm1081, %v70, %v1050
    %v1091 = vsel %vm1081, %v71, %v1052
    %v1092 = vsel %vm1081, %v72, %v1054
    %v1093 = vsel %vm1081, %v73, %v1056
    %v1094 = vsel %vm1081, %v74, %v1058
    %v1095 = vsel %vm1081, %v75, %v1060
    %v1096 = vsel %vm1081, %v76, %v1062
    %v1097 = vsel %vm1081, %v77, %v1064
    %1098 = vmatprep.subr.mxu0 0.0
    %1099 = vmatpush1.msra.mxu0 %v1082
    %1100 = vmatprep.subr.mxu0 0.0
    %1101 = vmatpush1.msra.mxu0 %v1083
    %1102 = vmatprep.subr.mxu0 0.0
    %1103 = vmatpush1.msra.mxu0 %v1084
    %1104 = vmatprep.subr.mxu0 0.0
    %1105 = vmatpush1.msra.mxu0 %v1085
    %1106 = vmatprep.subr.mxu0 0.0
    %1107 = vmatpush1.msra.mxu0 %v1086
    %1108 = vmatprep.subr.mxu0 0.0
    %1109 = vmatpush1.msra.mxu0 %v1087
    %1110 = vmatprep.subr.mxu0 0.0
    %1111 = vmatpush1.msra.mxu0 %v1088
    %1112 = vmatprep.subr.mxu0 0.0
    %1113 = vmatpush1.msra.mxu0 %v1089
    %1114 = vmatprep.subr.mxu0 0.0
    %1115 = vmatpush1.msra.mxu0 %v1090
    %1116 = vmatprep.subr.mxu0 0.0
    %1117 = vmatpush1.msra.mxu0 %v1091
    %1118 = vmatprep.subr.mxu0 0.0
    %1119 = vmatpush1.msra.mxu0 %v1092
    %1120 = vmatprep.subr.mxu0 0.0
    %1121 = vmatpush1.msra.mxu0 %v1093
    %1122 = vmatprep.subr.mxu0 0.0
    %1123 = vmatpush1.msra.mxu0 %v1094
    %1124 = vmatprep.subr.mxu0 0.0
    %1125 = vmatpush1.msra.mxu0 %v1095
    %1126 = vmatprep.subr.mxu0 0.0
    %1127 = vmatpush1.msra.mxu0 %v1096
    %1128 = vmatprep.subr.mxu0 0.0
    %1129 = vmatpush1.msra.mxu0 %v1097
    %1130 = vmatprep.subr.mxu0 0.0
    %1131 = vmatpush1.msra.mxu0 0.0
    %1132 = vmatprep.subr.mxu0 0.0
    %1133 = vmatpush1.msra.mxu0 0.0
    %1134 = vmatprep.subr.mxu0 0.0
    %1135 = vmatpush1.msra.mxu0 0.0
    %1136 = vmatprep.subr.mxu0 0.0
    %1137 = vmatpush1.msra.mxu0 0.0
    %1138 = vmatprep.subr.mxu0 0.0
    %1139 = vmatpush1.msra.mxu0 0.0
    %1140 = vmatprep.subr.mxu0 0.0
    %1141 = vmatpush1.msra.mxu0 0.0
    %1142 = vmatprep.subr.mxu0 0.0
    %1143 = vmatpush1.msra.mxu0 0.0
    %1144 = vmatprep.subr.mxu0 0.0
    %1145 = vmatpush1.msra.mxu0 0.0
    %1146 = vmatprep.subr.mxu0 0.0
    %1147 = vmatpush1.msra.mxu0 0.0
    %1148 = vmatprep.subr.mxu0 0.0
    %1149 = vmatpush1.msra.mxu0 0.0
    %1150 = vmatprep.subr.mxu0 0.0
    %1151 = vmatpush1.msra.mxu0 0.0
    %1152 = vmatprep.subr.mxu0 0.0
    %1153 = vmatpush1.msra.mxu0 0.0
    %1154 = vmatprep.subr.mxu0 0.0
    %1155 = vmatpush1.msra.mxu0 0.0
    %1156 = vmatprep.subr.mxu0 0.0
    %1157 = vmatpush1.msra.mxu0 0.0
    %1158 = vmatprep.subr.mxu0 0.0
    %1159 = vmatpush1.msra.mxu0 0.0
    %1160 = vmatprep.subr.mxu0 0.0
    %1161 = vmatpush1.msra.mxu0 0.0
    %1162 = vmatprep.mubr.f32.mxu0 0.0
    %1163 = vmatmul.mubr.f32.gmra.mrb[0].mxu0 %v30
    %v1164 = vpop.f32.mrb[0].mxu0
    %v1165 = vadd.f32 0.0, %v1164
    %v1166 = vpop.f32.mrb[0].mxu0
    %1167 = vmatprep.mubr.f32.mxu0 0.0
    %1168 = vmatmul.mubr.f32.gmra.mrb[0].mxu0 %v31
    %v1169 = vpop.f32.mrb[0].mxu0
    %v1170 = vadd.f32 0.0, %v1169
    %v1171 = vpop.f32.mrb[0].mxu0
    %1172 = vmatprep.mubr.f32.mxu0 0.0
    %1173 = vmatmul.mubr.f32.gmra.mrb[0].mxu0 %v32
    %v1174 = vpop.f32.mrb[0].mxu0
    %v1175 = vadd.f32 0.0, %v1174
    %v1176 = vpop.f32.mrb[0].mxu0
    %1177 = vmatprep.mubr.f32.mxu0 0.0
    %1178 = vmatmul.mubr.f32.gmra.mrb[0].mxu0 %v33
    %v1179 = vpop.f32.mrb[0].mxu0
    %v1180 = vadd.f32 0.0, %v1179
    %v1181 = vpop.f32.mrb[0].mxu0
    %1182 = vmatprep.mubr.f32.mxu0 0.0
    %1183 = vmatmul.mubr.f32.gmra.mrb[0].mxu0 %v34
    %v1184 = vpop.f32.mrb[0].mxu0
    %v1185 = vadd.f32 0.0, %v1184
    %v1186 = vpop.f32.mrb[0].mxu0
    %1187 = vmatprep.mubr.f32.mxu0 0.0
    %1188 = vmatmul.mubr.f32.gmra.mrb[0].mxu0 %v35
    %v1189 = vpop.f32.mrb[0].mxu0
    %v1190 = vadd.f32 0.0, %v1189
    %v1191 = vpop.f32.mrb[0].mxu0
    %1192 = vmatprep.mubr.f32.mxu0 0.0
    %1193 = vmatmul.mubr.f32.gmra.mrb[0].mxu0 %v36
    %v1194 = vpop.f32.mrb[0].mxu0
    %v1195 = vadd.f32 0.0, %v1194
    %v1196 = vpop.f32.mrb[0].mxu0
    %1197 = vmatprep.mubr.f32.mxu0 0.0
    %1198 = vmatmul.mubr.f32.gmra.mrb[0].mxu0 %v37
    %v1199 = vpop.f32.mrb[0].mxu0
    %v1200 = vadd.f32 0.0, %v1199
    %v1201 = vpop.f32.mrb[0].mxu0
    %1202 = vmatprep.mubr.f32.mxu0 0.0
    %1203 = vmatmul.mubr.f32.gmra.mrb[0].mxu0 %v38
    %v1204 = vpop.f32.mrb[0].mxu0
    %v1205 = vadd.f32 0.0, %v1204
    %v1206 = vpop.f32.mrb[0].mxu0
    %1207 = vmatprep.mubr.f32.mxu0 0.0
    %1208 = vmatmul.mubr.f32.gmra.mrb[0].mxu0 %v39
    %v1209 = vpop.f32.mrb[0].mxu0
    %v1210 = vadd.f32 0.0, %v1209
    %v1211 = vpop.f32.mrb[0].mxu0
    %1212 = vmatprep.mubr.f32.mxu0 0.0
    %1213 = vmatmul.mubr.f32.gmra.mrb[0].mxu0 %v40
    %v1214 = vpop.f32.mrb[0].mxu0
    %v1215 = vadd.f32 0.0, %v1214
    %v1216 = vpop.f32.mrb[0].mxu0
    %1217 = vmatprep.mubr.f32.mxu0 0.0
    %1218 = vmatmul.mubr.f32.gmra.mrb[0].mxu0 %v41
    %v1219 = vpop.f32.mrb[0].mxu0
    %v1220 = vadd.f32 0.0, %v1219
    %v1221 = vpop.f32.mrb[0].mxu0
    %1222 = vmatprep.mubr.f32.mxu0 0.0
    %1223 = vmatmul.mubr.f32.gmra.mrb[0].mxu0 %v42
    %v1224 = vpop.f32.mrb[0].mxu0
    %v1225 = vadd.f32 0.0, %v1224
    %v1226 = vpop.f32.mrb[0].mxu0
    %1227 = vmatprep.mubr.f32.mxu0 0.0
    %1228 = vmatmul.mubr.f32.gmra.mrb[0].mxu0 %v43
    %v1229 = vpop.f32.mrb[0].mxu0
    %v1230 = vadd.f32 0.0, %v1229
    %v1231 = vpop.f32.mrb[0].mxu0
    %1232 = vmatprep.mubr.f32.mxu0 0.0
    %1233 = vmatmul.mubr.f32.gmra.mrb[0].mxu0 %v44
    %v1234 = vpop.f32.mrb[0].mxu0
    %v1235 = vadd.f32 0.0, %v1234
    %v1236 = vpop.f32.mrb[0].mxu0
    %1237 = vmatprep.mubr.f32.mxu0 0.0
    %1238 = vmatmul.mubr.f32.gmra.mrb[0].mxu0 %v45
    %v1239 = vpop.f32.mrb[0].mxu0
    %v1240 = vadd.f32 0.0, %v1239
    %v1241 = vpop.f32.mrb[0].mxu0
    %1242 = vdwg.mxu0
    %v1243 = vmax.f32 %v986, 1.0
    %v1244 = vmax.f32 %v988, 1.0
    %v1245 = vmax.f32 %v990, 1.0
    %v1246 = vmax.f32 %v992, 1.0
    %v1247 = vmax.f32 %v994, 1.0
    %v1248 = vmax.f32 %v996, 1.0
    %v1249 = vmax.f32 %v998, 1.0
    %v1250 = vmax.f32 %v1000, 1.0
    %v1251 = vmax.f32 %v1002, 1.0
    %v1252 = vmax.f32 %v1004, 1.0
    %v1253 = vmax.f32 %v1006, 1.0
    %v1254 = vmax.f32 %v1008, 1.0
    %v1255 = vmax.f32 %v1010, 1.0
    %v1256 = vmax.f32 %v1012, 1.0
    %v1257 = vmax.f32 %v1014, 1.0
    %v1258 = vmax.f32 %v1016, 1.0
    %v1259 = vrcp.pop %v1243
    %v1260 = vmul.f32 %v1165, %v1259
    %v1261 = vrcp.pop %v1244
    %v1262 = vmul.f32 %v1170, %v1261
    %v1263 = vrcp.pop %v1245
    %v1264 = vmul.f32 %v1175, %v1263
    %v1265 = vrcp.pop %v1246
    %v1266 = vmul.f32 %v1180, %v1265
    %v1267 = vrcp.pop %v1247
    %v1268 = vmul.f32 %v1185, %v1267
    %v1269 = vrcp.pop %v1248
    %v1270 = vmul.f32 %v1190, %v1269
    %v1271 = vrcp.pop %v1249
    %v1272 = vmul.f32 %v1195, %v1271
    %v1273 = vrcp.pop %v1250
    %v1274 = vmul.f32 %v1200, %v1273
    %v1275 = vrcp.pop %v1251
    %v1276 = vmul.f32 %v1205, %v1275
    %v1277 = vrcp.pop %v1252
    %v1278 = vmul.f32 %v1210, %v1277
    %v1279 = vrcp.pop %v1253
    %v1280 = vmul.f32 %v1215, %v1279
    %v1281 = vrcp.pop %v1254
    %v1282 = vmul.f32 %v1220, %v1281
    %v1283 = vrcp.pop %v1255
    %v1284 = vmul.f32 %v1225, %v1283
    %v1285 = vrcp.pop %v1256
    %v1286 = vmul.f32 %v1230, %v1285
    %v1287 = vrcp.pop %v1257
    %v1288 = vmul.f32 %v1235, %v1287
    %v1289 = vrcp.pop %v1258
    %v1290 = vmul.f32 %v1240, %v1289
    %1307 = vrot.lane.b32.xlu0 %v1260, 8
    %v1308 = vpop.permute.xlu0 %1307
    %1309 = vrot.lane.b32.xlu0 %v1262, 8
    %v1310 = vpop.permute.xlu0 %1309
    %1311 = vrot.lane.b32.xlu0 %v1264, 8
    %v1312 = vpop.permute.xlu0 %1311
    %1313 = vrot.lane.b32.xlu0 %v1266, 8
    %v1314 = vpop.permute.xlu0 %1313
    %1315 = vrot.lane.b32.xlu0 %v1268, 8
    %v1316 = vpop.permute.xlu0 %1315
    %1317 = vrot.lane.b32.xlu0 %v1270, 8
    %v1318 = vpop.permute.xlu0 %1317
    %1319 = vrot.lane.b32.xlu0 %v1272, 8
    %v1320 = vpop.permute.xlu0 %1319
    %1321 = vrot.lane.b32.xlu0 %v1274, 8
    %v1322 = vpop.permute.xlu0 %1321
    %1323 = vrot.lane.b32.xlu0 %v1276, 8
    %v1324 = vpop.permute.xlu0 %1323
    %1325 = vrot.lane.b32.xlu0 %v1278, 8
    %v1326 = vpop.permute.xlu0 %1325
    %1327 = vrot.lane.b32.xlu0 %v1280, 8
    %v1328 = vpop.permute.xlu0 %1327
    %1329 = vrot.lane.b32.xlu0 %v1282, 8
    %v1330 = vpop.permute.xlu0 %1329
    %1331 = vrot.lane.b32.xlu0 %v1284, 8
    %v1332 = vpop.permute.xlu0 %1331
    %1333 = vrot.lane.b32.xlu0 %v1286, 8
    %v1334 = vpop.permute.xlu0 %1333
    %1335 = vrot.lane.b32.xlu0 %v1288, 8
    %v1336 = vpop.permute.xlu0 %1335
    %1337 = vrot.lane.b32.xlu0 %v1290, 8
    %v1338 = vpop.permute.xlu0 %1337
    %v1355 = vsel %vm1081, %v62, %v1308
    %v1356 = vsel %vm1081, %v63, %v1310
    %v1357 = vsel %vm1081, %v64, %v1312
    %v1358 = vsel %vm1081, %v65, %v1314
    %v1359 = vsel %vm1081, %v66, %v1316
    %v1360 = vsel %vm1081, %v67, %v1318
    %v1361 = vsel %vm1081, %v68, %v1320
    %v1362 = vsel %vm1081, %v69, %v1322
    %v1363 = vsel %vm1081, %v70, %v1324
    %v1364 = vsel %vm1081, %v71, %v1326
    %v1365 = vsel %vm1081, %v72, %v1328
    %v1366 = vsel %vm1081, %v73, %v1330
    %v1367 = vsel %vm1081, %v74, %v1332
    %v1368 = vsel %vm1081, %v75, %v1334
    %v1369 = vsel %vm1081, %v76, %v1336
    %v1370 = vsel %vm1081, %v77, %v1338
    %1371 = vrot.lane.b32.xlu0 %v12, 32
    %v1372 = vpop.permute.xlu0 %1371
    %1373 = vrot.lane.b32.xlu0 %v13, 32
    %v1374 = vpop.permute.xlu0 %1373
    %1377 = vrot.lane.b32.xlu0 %v315, 20
    %v1378 = vpop.permute.xlu0 %1377
    %v1381 = vsel %vm134, %v1355, 0
    %v1384 = vsel %vm134, %v1356, 0
    %v1387 = vsel %vm134, %v1357, 0
    %v1390 = vsel %vm134, %v1358, 0
    %v1393 = vsel %vm134, %v1359, 0
    %v1396 = vsel %vm134, %v1360, 0
    %v1399 = vsel %vm134, %v1361, 0
    %v1402 = vsel %vm134, %v1362, 0
    %v1405 = vsel %vm134, %v1363, 0
    %v1408 = vsel %vm134, %v1364, 0
    %v1411 = vsel %vm134, %v1365, 0
    %v1414 = vsel %vm134, %v1366, 0
    %v1417 = vsel %vm134, %v1367, 0
    %v1420 = vsel %vm134, %v1368, 0
    %v1423 = vsel %vm134, %v1369, 0
    %v1426 = vsel %vm134, %v1370, 0
    %1428 = vmatprep.subr.mxu0 0.0
    %1429 = vmatpush1.msra.mxu0 %v1372
    %1430 = vmatprep.subr.mxu0 0.0
    %1431 = vmatpush1.msra.mxu0 %v1374
    %1432 = vmatprep.subr.mxu0 0.0
    %1433 = vmatpush1.msra.mxu0 0.0
    %1434 = vmatprep.subr.mxu0 0.0
    %1435 = vmatpush1.msra.mxu0 0.0
    %1436 = vmatprep.subr.mxu0 0.0
    %1437 = vmatpush1.msra.mxu0 0.0
    %1438 = vmatprep.subr.mxu0 0.0
    %1439 = vmatpush1.msra.mxu0 0.0
    %1440 = vmatprep.subr.mxu0 0.0
    %1441 = vmatpush1.msra.mxu0 0.0
    %1442 = vmatprep.subr.mxu0 0.0
    %1443 = vmatpush1.msra.mxu0 0.0
    %1444 = vmatprep.subr.mxu0 0.0
    %1445 = vmatpush1.msra.mxu0 0.0
    %1446 = vmatprep.subr.mxu0 0.0
    %1447 = vmatpush1.msra.mxu0 0.0
    %1448 = vmatprep.subr.mxu0 0.0
    %1449 = vmatpush1.msra.mxu0 0.0
    %1450 = vmatprep.subr.mxu0 0.0
    %1451 = vmatpush1.msra.mxu0 0.0
    %1452 = vmatprep.subr.mxu0 0.0
    %1453 = vmatpush1.msra.mxu0 0.0
    %1454 = vmatprep.subr.mxu0 0.0
    %1455 = vmatpush1.msra.mxu0 0.0
    %1456 = vmatprep.subr.mxu0 0.0
    %1457 = vmatpush1.msra.mxu0 0.0
    %1458 = vmatprep.subr.mxu0 0.0
    %1459 = vmatpush1.msra.mxu0 0.0
    %1460 = vmatprep.subr.mxu0 0.0
    %1461 = vmatpush1.msra.mxu0 0.0
    %1462 = vmatprep.subr.mxu0 0.0
    %1463 = vmatpush1.msra.mxu0 0.0
    %1464 = vmatprep.subr.mxu0 0.0
    %1465 = vmatpush1.msra.mxu0 0.0
    %1466 = vmatprep.subr.mxu0 0.0
    %1467 = vmatpush1.msra.mxu0 0.0
    %1468 = vmatprep.subr.mxu0 0.0
    %1469 = vmatpush1.msra.mxu0 0.0
    %1470 = vmatprep.subr.mxu0 0.0
    %1471 = vmatpush1.msra.mxu0 0.0
    %1472 = vmatprep.subr.mxu0 0.0
    %1473 = vmatpush1.msra.mxu0 0.0
    %1474 = vmatprep.subr.mxu0 0.0
    %1475 = vmatpush1.msra.mxu0 0.0
    %1476 = vmatprep.subr.mxu0 0.0
    %1477 = vmatpush1.msra.mxu0 0.0
    %1478 = vmatprep.subr.mxu0 0.0
    %1479 = vmatpush1.msra.mxu0 0.0
    %1480 = vmatprep.subr.mxu0 0.0
    %1481 = vmatpush1.msra.mxu0 0.0
    %1482 = vmatprep.subr.mxu0 0.0
    %1483 = vmatpush1.msra.mxu0 0.0
    %1484 = vmatprep.subr.mxu0 0.0
    %1485 = vmatpush1.msra.mxu0 0.0
    %1486 = vmatprep.subr.mxu0 0.0
    %1487 = vmatpush1.msra.mxu0 0.0
    %1488 = vmatprep.subr.mxu0 0.0
    %1489 = vmatpush1.msra.mxu0 0.0
    %1490 = vmatprep.subr.mxu0 0.0
    %1491 = vmatpush1.msra.mxu0 0.0
    %1492 = vmatprep.mubr.f32.mxu0 0.0
    %1493 = vmatmul.mubr.f32.gmra.mrb[0].mxu0 %v1381
    %v1494 = vpop.f32.mrb[0].mxu0
    %v1495 = vadd.f32 %v1378, %v1494
    %v1496 = vpop.f32.mrb[0].mxu0
    %1497 = vmatprep.mubr.f32.mxu0 0.0
    %1498 = vmatmul.mubr.f32.gmra.mrb[0].mxu0 %v1384
    %v1499 = vpop.f32.mrb[0].mxu0
    %v1500 = vadd.f32 %v1378, %v1499
    %v1501 = vpop.f32.mrb[0].mxu0
    %1502 = vmatprep.mubr.f32.mxu0 0.0
    %1503 = vmatmul.mubr.f32.gmra.mrb[0].mxu0 %v1387
    %v1504 = vpop.f32.mrb[0].mxu0
    %v1505 = vadd.f32 %v1378, %v1504
    %v1506 = vpop.f32.mrb[0].mxu0
    %1507 = vmatprep.mubr.f32.mxu0 0.0
    %1508 = vmatmul.mubr.f32.gmra.mrb[0].mxu0 %v1390
    %v1509 = vpop.f32.mrb[0].mxu0
    %v1510 = vadd.f32 %v1378, %v1509
    %v1511 = vpop.f32.mrb[0].mxu0
    %1512 = vmatprep.mubr.f32.mxu0 0.0
    %1513 = vmatmul.mubr.f32.gmra.mrb[0].mxu0 %v1393
    %v1514 = vpop.f32.mrb[0].mxu0
    %v1515 = vadd.f32 %v1378, %v1514
    %v1516 = vpop.f32.mrb[0].mxu0
    %1517 = vmatprep.mubr.f32.mxu0 0.0
    %1518 = vmatmul.mubr.f32.gmra.mrb[0].mxu0 %v1396
    %v1519 = vpop.f32.mrb[0].mxu0
    %v1520 = vadd.f32 %v1378, %v1519
    %v1521 = vpop.f32.mrb[0].mxu0
    %1522 = vmatprep.mubr.f32.mxu0 0.0
    %1523 = vmatmul.mubr.f32.gmra.mrb[0].mxu0 %v1399
    %v1524 = vpop.f32.mrb[0].mxu0
    %v1525 = vadd.f32 %v1378, %v1524
    %v1526 = vpop.f32.mrb[0].mxu0
    %1527 = vmatprep.mubr.f32.mxu0 0.0
    %1528 = vmatmul.mubr.f32.gmra.mrb[0].mxu0 %v1402
    %v1529 = vpop.f32.mrb[0].mxu0
    %v1530 = vadd.f32 %v1378, %v1529
    %v1531 = vpop.f32.mrb[0].mxu0
    %1532 = vmatprep.mubr.f32.mxu0 0.0
    %1533 = vmatmul.mubr.f32.gmra.mrb[0].mxu0 %v1405
    %v1534 = vpop.f32.mrb[0].mxu0
    %v1535 = vadd.f32 %v1378, %v1534
    %v1536 = vpop.f32.mrb[0].mxu0
    %1537 = vmatprep.mubr.f32.mxu0 0.0
    %1538 = vmatmul.mubr.f32.gmra.mrb[0].mxu0 %v1408
    %v1539 = vpop.f32.mrb[0].mxu0
    %v1540 = vadd.f32 %v1378, %v1539
    %v1541 = vpop.f32.mrb[0].mxu0
    %1542 = vmatprep.mubr.f32.mxu0 0.0
    %1543 = vmatmul.mubr.f32.gmra.mrb[0].mxu0 %v1411
    %v1544 = vpop.f32.mrb[0].mxu0
    %v1545 = vadd.f32 %v1378, %v1544
    %v1546 = vpop.f32.mrb[0].mxu0
    %1547 = vmatprep.mubr.f32.mxu0 0.0
    %1548 = vmatmul.mubr.f32.gmra.mrb[0].mxu0 %v1414
    %v1549 = vpop.f32.mrb[0].mxu0
    %v1550 = vadd.f32 %v1378, %v1549
    %v1551 = vpop.f32.mrb[0].mxu0
    %1552 = vmatprep.mubr.f32.mxu0 0.0
    %1553 = vmatmul.mubr.f32.gmra.mrb[0].mxu0 %v1417
    %v1554 = vpop.f32.mrb[0].mxu0
    %v1555 = vadd.f32 %v1378, %v1554
    %v1556 = vpop.f32.mrb[0].mxu0
    %1557 = vmatprep.mubr.f32.mxu0 0.0
    %1558 = vmatmul.mubr.f32.gmra.mrb[0].mxu0 %v1420
    %v1559 = vpop.f32.mrb[0].mxu0
    %v1560 = vadd.f32 %v1378, %v1559
    %v1561 = vpop.f32.mrb[0].mxu0
    %1562 = vmatprep.mubr.f32.mxu0 0.0
    %1563 = vmatmul.mubr.f32.gmra.mrb[0].mxu0 %v1423
    %v1564 = vpop.f32.mrb[0].mxu0
    %v1565 = vadd.f32 %v1378, %v1564
    %v1566 = vpop.f32.mrb[0].mxu0
    %1567 = vmatprep.mubr.f32.mxu0 0.0
    %1568 = vmatmul.mubr.f32.gmra.mrb[0].mxu0 %v1426
    %v1569 = vpop.f32.mrb[0].mxu0
    %v1570 = vadd.f32 %v1378, %v1569
    %v1571 = vpop.f32.mrb[0].mxu0
    %1572 = vdwg.mxu0
    %v1573 = vmul.f32 %v1495, %v1495
    %v1574 = vmul.f32 %v1500, %v1500
    %v1575 = vmul.f32 %v1505, %v1505
    %v1576 = vmul.f32 %v1510, %v1510
    %v1577 = vmul.f32 %v1515, %v1515
    %v1578 = vmul.f32 %v1520, %v1520
    %v1579 = vmul.f32 %v1525, %v1525
    %v1580 = vmul.f32 %v1530, %v1530
    %v1581 = vmul.f32 %v1535, %v1535
    %v1582 = vmul.f32 %v1540, %v1540
    %v1583 = vmul.f32 %v1545, %v1545
    %v1584 = vmul.f32 %v1550, %v1550
    %v1585 = vmul.f32 %v1555, %v1555
    %v1586 = vmul.f32 %v1560, %v1560
    %v1587 = vmul.f32 %v1565, %v1565
    %v1588 = vmul.f32 %v1570, %v1570
    %v1589 = vsel %vm1081, %v1573, 0.0
    %1590 = vadd.xlane.f32.xlu0 %v1589
    %v1591 = vpop.xlane.xlu0 %1590
    %v1592 = vsel %vm1081, %v1574, 0.0
    %1593 = vadd.xlane.f32.xlu0 %v1592
    %v1594 = vpop.xlane.xlu0 %1593
    %v1595 = vsel %vm1081, %v1575, 0.0
    %1596 = vadd.xlane.f32.xlu0 %v1595
    %v1597 = vpop.xlane.xlu0 %1596
    %v1598 = vsel %vm1081, %v1576, 0.0
    %1599 = vadd.xlane.f32.xlu0 %v1598
    %v1600 = vpop.xlane.xlu0 %1599
    %v1601 = vsel %vm1081, %v1577, 0.0
    %1602 = vadd.xlane.f32.xlu0 %v1601
    %v1603 = vpop.xlane.xlu0 %1602
    %v1604 = vsel %vm1081, %v1578, 0.0
    %1605 = vadd.xlane.f32.xlu0 %v1604
    %v1606 = vpop.xlane.xlu0 %1605
    %v1607 = vsel %vm1081, %v1579, 0.0
    %1608 = vadd.xlane.f32.xlu0 %v1607
    %v1609 = vpop.xlane.xlu0 %1608
    %v1610 = vsel %vm1081, %v1580, 0.0
    %1611 = vadd.xlane.f32.xlu0 %v1610
    %v1612 = vpop.xlane.xlu0 %1611
    %v1613 = vsel %vm1081, %v1581, 0.0
    %1614 = vadd.xlane.f32.xlu0 %v1613
    %v1615 = vpop.xlane.xlu0 %1614
    %v1616 = vsel %vm1081, %v1582, 0.0
    %1617 = vadd.xlane.f32.xlu0 %v1616
    %v1618 = vpop.xlane.xlu0 %1617
    %v1619 = vsel %vm1081, %v1583, 0.0
    %1620 = vadd.xlane.f32.xlu0 %v1619
    %v1621 = vpop.xlane.xlu0 %1620
    %v1622 = vsel %vm1081, %v1584, 0.0
    %1623 = vadd.xlane.f32.xlu0 %v1622
    %v1624 = vpop.xlane.xlu0 %1623
    %v1625 = vsel %vm1081, %v1585, 0.0
    %1626 = vadd.xlane.f32.xlu0 %v1625
    %v1627 = vpop.xlane.xlu0 %1626
    %v1628 = vsel %vm1081, %v1586, 0.0
    %1629 = vadd.xlane.f32.xlu0 %v1628
    %v1630 = vpop.xlane.xlu0 %1629
    %v1631 = vsel %vm1081, %v1587, 0.0
    %1632 = vadd.xlane.f32.xlu0 %v1631
    %v1633 = vpop.xlane.xlu0 %1632
    %v1634 = vsel %vm1081, %v1588, 0.0
    %1635 = vadd.xlane.f32.xlu0 %v1634
    %v1636 = vpop.xlane.xlu0 %1635
    %v1637 = vmax.f32 %v1591, 1e-24
    %v1638 = vmax.f32 %v1594, 1e-24
    %v1639 = vmax.f32 %v1597, 1e-24
    %v1640 = vmax.f32 %v1600, 1e-24
    %v1641 = vmax.f32 %v1603, 1e-24
    %v1642 = vmax.f32 %v1606, 1e-24
    %v1643 = vmax.f32 %v1609, 1e-24
    %v1644 = vmax.f32 %v1612, 1e-24
    %v1645 = vmax.f32 %v1615, 1e-24
    %v1646 = vmax.f32 %v1618, 1e-24
    %v1647 = vmax.f32 %v1621, 1e-24
    %v1648 = vmax.f32 %v1624, 1e-24
    %v1649 = vmax.f32 %v1627, 1e-24
    %v1650 = vmax.f32 %v1630, 1e-24
    %v1651 = vmax.f32 %v1633, 1e-24
    %v1652 = vmax.f32 %v1636, 1e-24
    %v1653 = vrsqrt.pop %v1637
    %v1654 = vrsqrt.pop %v1638
    %v1655 = vrsqrt.pop %v1639
    %v1656 = vrsqrt.pop %v1640
    %v1657 = vrsqrt.pop %v1641
    %v1658 = vrsqrt.pop %v1642
    %v1659 = vrsqrt.pop %v1643
    %v1660 = vrsqrt.pop %v1644
    %v1661 = vrsqrt.pop %v1645
    %v1662 = vrsqrt.pop %v1646
    %v1663 = vrsqrt.pop %v1647
    %v1664 = vrsqrt.pop %v1648
    %v1665 = vrsqrt.pop %v1649
    %v1666 = vrsqrt.pop %v1650
    %v1667 = vrsqrt.pop %v1651
    %v1668 = vrsqrt.pop %v1652
    %v1669 = vmul.f32 %v1495, %v1653
    %v1670 = vmul.f32 %v1500, %v1654
    %v1671 = vmul.f32 %v1505, %v1655
    %v1672 = vmul.f32 %v1510, %v1656
    %v1673 = vmul.f32 %v1515, %v1657
    %v1674 = vmul.f32 %v1520, %v1658
    %v1675 = vmul.f32 %v1525, %v1659
    %v1676 = vmul.f32 %v1530, %v1660
    %v1677 = vmul.f32 %v1535, %v1661
    %v1678 = vmul.f32 %v1540, %v1662
    %v1679 = vmul.f32 %v1545, %v1663
    %v1680 = vmul.f32 %v1550, %v1664
    %v1681 = vmul.f32 %v1555, %v1665
    %v1682 = vmul.f32 %v1560, %v1666
    %v1683 = vmul.f32 %v1565, %v1667
    %v1684 = vmul.f32 %v1570, %v1668
    %v1685 = vmax.f32 %v1669, 0.0
    %v1686 = vmax.f32 %v1670, 0.0
    %v1687 = vmax.f32 %v1671, 0.0
    %v1688 = vmax.f32 %v1672, 0.0
    %v1689 = vmax.f32 %v1673, 0.0
    %v1690 = vmax.f32 %v1674, 0.0
    %v1691 = vmax.f32 %v1675, 0.0
    %v1692 = vmax.f32 %v1676, 0.0
    %v1693 = vmax.f32 %v1677, 0.0
    %v1694 = vmax.f32 %v1678, 0.0
    %v1695 = vmax.f32 %v1679, 0.0
    %v1696 = vmax.f32 %v1680, 0.0
    %v1697 = vmax.f32 %v1681, 0.0
    %v1698 = vmax.f32 %v1682, 0.0
    %v1699 = vmax.f32 %v1683, 0.0
    %v1700 = vmax.f32 %v1684, 0.0
    %v1701 = vsel %vm1081, %v1685, %v1165
    %v1702 = vsel %vm1081, %v1686, %v1170
    %v1703 = vsel %vm1081, %v1687, %v1175
    %v1704 = vsel %vm1081, %v1688, %v1180
    %v1705 = vsel %vm1081, %v1689, %v1185
    %v1706 = vsel %vm1081, %v1690, %v1190
    %v1707 = vsel %vm1081, %v1691, %v1195
    %v1708 = vsel %vm1081, %v1692, %v1200
    %v1709 = vsel %vm1081, %v1693, %v1205
    %v1710 = vsel %vm1081, %v1694, %v1210
    %v1711 = vsel %vm1081, %v1695, %v1215
    %v1712 = vsel %vm1081, %v1696, %v1220
    %v1713 = vsel %vm1081, %v1697, %v1225
    %v1714 = vsel %vm1081, %v1698, %v1230
    %v1715 = vsel %vm1081, %v1699, %v1235
    %v1716 = vsel %vm1081, %v1700, %v1240
    %1717 = vxpose.xlu0.b32.start [1/16] %v969, 128
    %1718 = vxpose.xlu0.b32.cont [2/16] %v970, 128
    %1719 = vxpose.xlu0.b32.cont [3/16] %v971, 128
    %1720 = vxpose.xlu0.b32.cont [4/16] %v972, 128
    %1721 = vxpose.xlu0.b32.cont [5/16] %v973, 128
    %1722 = vxpose.xlu0.b32.cont [6/16] %v974, 128
    %1723 = vxpose.xlu0.b32.cont [7/16] %v975, 128
    %1724 = vxpose.xlu0.b32.cont [8/16] %v976, 128
    %1725 = vxpose.xlu0.b32.cont [9/16] %v977, 128
    %1726 = vxpose.xlu0.b32.cont [10/16] %v978, 128
    %1727 = vxpose.xlu0.b32.cont [11/16] %v979, 128
    %1728 = vxpose.xlu0.b32.cont [12/16] %v980, 128
    %1729 = vxpose.xlu0.b32.cont [13/16] %v981, 128
    %1730 = vxpose.xlu0.b32.cont [14/16] %v982, 128
    %1731 = vxpose.xlu0.b32.cont [15/16] %v983, 128
    %1732 = vxpose.xlu0.b32.end [16/16] %v984, 128
    %v1733 = vpop.trf.xlu0
    %v1734 = vpop.trf.xlu0
    %v1735 = vpop.trf.xlu0
    %v1736 = vpop.trf.xlu0
    %v1737 = vpop.trf.xlu0
    %v1738 = vpop.trf.xlu0
    %v1739 = vpop.trf.xlu0
    %v1740 = vpop.trf.xlu0
    %v1741 = vpop.trf.xlu0
    %v1742 = vpop.trf.xlu0
    %v1743 = vpop.trf.xlu0
    %v1744 = vpop.trf.xlu0
    %v1745 = vpop.trf.xlu0
    %v1746 = vpop.trf.xlu0
    %v1747 = vpop.trf.xlu0
    %v1748 = vpop.trf.xlu0
    %1749 = vmatprep.subr.mxu0 0.0
    %1750 = vmatpush1.msra.mxu0 %v1701
    %1751 = vmatprep.subr.mxu0 0.0
    %1752 = vmatpush1.msra.mxu0 %v1702
    %1753 = vmatprep.subr.mxu0 0.0
    %1754 = vmatpush1.msra.mxu0 %v1703
    %1755 = vmatprep.subr.mxu0 0.0
    %1756 = vmatpush1.msra.mxu0 %v1704
    %1757 = vmatprep.subr.mxu0 0.0
    %1758 = vmatpush1.msra.mxu0 %v1705
    %1759 = vmatprep.subr.mxu0 0.0
    %1760 = vmatpush1.msra.mxu0 %v1706
    %1761 = vmatprep.subr.mxu0 0.0
    %1762 = vmatpush1.msra.mxu0 %v1707
    %1763 = vmatprep.subr.mxu0 0.0
    %1764 = vmatpush1.msra.mxu0 %v1708
    %1765 = vmatprep.subr.mxu0 0.0
    %1766 = vmatpush1.msra.mxu0 %v1709
    %1767 = vmatprep.subr.mxu0 0.0
    %1768 = vmatpush1.msra.mxu0 %v1710
    %1769 = vmatprep.subr.mxu0 0.0
    %1770 = vmatpush1.msra.mxu0 %v1711
    %1771 = vmatprep.subr.mxu0 0.0
    %1772 = vmatpush1.msra.mxu0 %v1712
    %1773 = vmatprep.subr.mxu0 0.0
    %1774 = vmatpush1.msra.mxu0 %v1713
    %1775 = vmatprep.subr.mxu0 0.0
    %1776 = vmatpush1.msra.mxu0 %v1714
    %1777 = vmatprep.subr.mxu0 0.0
    %1778 = vmatpush1.msra.mxu0 %v1715
    %1779 = vmatprep.subr.mxu0 0.0
    %1780 = vmatpush1.msra.mxu0 %v1716
    %1781 = vmatprep.subr.mxu0 0.0
    %1782 = vmatpush1.msra.mxu0 0.0
    %1783 = vmatprep.subr.mxu0 0.0
    %1784 = vmatpush1.msra.mxu0 0.0
    %1785 = vmatprep.subr.mxu0 0.0
    %1786 = vmatpush1.msra.mxu0 0.0
    %1787 = vmatprep.subr.mxu0 0.0
    %1788 = vmatpush1.msra.mxu0 0.0
    %1789 = vmatprep.subr.mxu0 0.0
    %1790 = vmatpush1.msra.mxu0 0.0
    %1791 = vmatprep.subr.mxu0 0.0
    %1792 = vmatpush1.msra.mxu0 0.0
    %1793 = vmatprep.subr.mxu0 0.0
    %1794 = vmatpush1.msra.mxu0 0.0
    %1795 = vmatprep.subr.mxu0 0.0
    %1796 = vmatpush1.msra.mxu0 0.0
    %1797 = vmatprep.subr.mxu0 0.0
    %1798 = vmatpush1.msra.mxu0 0.0
    %1799 = vmatprep.subr.mxu0 0.0
    %1800 = vmatpush1.msra.mxu0 0.0
    %1801 = vmatprep.subr.mxu0 0.0
    %1802 = vmatpush1.msra.mxu0 0.0
    %1803 = vmatprep.subr.mxu0 0.0
    %1804 = vmatpush1.msra.mxu0 0.0
    %1805 = vmatprep.subr.mxu0 0.0
    %1806 = vmatpush1.msra.mxu0 0.0
    %1807 = vmatprep.subr.mxu0 0.0
    %1808 = vmatpush1.msra.mxu0 0.0
    %1809 = vmatprep.subr.mxu0 0.0
    %1810 = vmatpush1.msra.mxu0 0.0
    %1811 = vmatprep.subr.mxu0 0.0
    %1812 = vmatpush1.msra.mxu0 0.0
    %1813 = vmatprep.mubr.f32.mxu0 0.0
    %1814 = vmatmul.mubr.f32.gmra.mrb[0].mxu0 %v1733
    %v1815 = vpop.f32.mrb[0].mxu0
    %v1816 = vadd.f32 0.0, %v1815
    %v1817 = vpop.f32.mrb[0].mxu0
    %1818 = vmatprep.mubr.f32.mxu0 0.0
    %1819 = vmatmul.mubr.f32.gmra.mrb[0].mxu0 %v1734
    %v1820 = vpop.f32.mrb[0].mxu0
    %v1821 = vadd.f32 0.0, %v1820
    %v1822 = vpop.f32.mrb[0].mxu0
    %1823 = vmatprep.mubr.f32.mxu0 0.0
    %1824 = vmatmul.mubr.f32.gmra.mrb[0].mxu0 %v1735
    %v1825 = vpop.f32.mrb[0].mxu0
    %v1826 = vadd.f32 0.0, %v1825
    %v1827 = vpop.f32.mrb[0].mxu0
    %1828 = vmatprep.mubr.f32.mxu0 0.0
    %1829 = vmatmul.mubr.f32.gmra.mrb[0].mxu0 %v1736
    %v1830 = vpop.f32.mrb[0].mxu0
    %v1831 = vadd.f32 0.0, %v1830
    %v1832 = vpop.f32.mrb[0].mxu0
    %1833 = vdwg.mxu0
    %vm1834 = vcmask 261120
    %v1835 = vsel %vm1834, %v969, 0
    %v1837 = vsel %vm1834, %v970, 0
    %v1839 = vsel %vm1834, %v971, 0
    %v1841 = vsel %vm1834, %v972, 0
    %v1843 = vsel %vm1834, %v973, 0
    %v1845 = vsel %vm1834, %v974, 0
    %v1847 = vsel %vm1834, %v975, 0
    %v1849 = vsel %vm1834, %v976, 0
    %v1851 = vsel %vm1834, %v977, 0
    %v1853 = vsel %vm1834, %v978, 0
    %v1855 = vsel %vm1834, %v979, 0
    %v1857 = vsel %vm1834, %v980, 0
    %v1859 = vsel %vm1834, %v981, 0
    %v1861 = vsel %vm1834, %v982, 0
    %v1863 = vsel %vm1834, %v983, 0
    %v1865 = vsel %vm1834, %v984, 0
    %1867 = vmatprep.subr.mxu0 0.0
    %1868 = vmatpush1.xpose.msra.mxu0 %v1835
    %1869 = vmatprep.subr.mxu0 0.0
    %1870 = vmatpush1.xpose.msra.mxu0 %v1837
    %1871 = vmatprep.subr.mxu0 0.0
    %1872 = vmatpush1.xpose.msra.mxu0 %v1839
    %1873 = vmatprep.subr.mxu0 0.0
    %1874 = vmatpush1.xpose.msra.mxu0 %v1841
    %1875 = vmatprep.subr.mxu0 0.0
    %1876 = vmatpush1.xpose.msra.mxu0 %v1843
    %1877 = vmatprep.subr.mxu0 0.0
    %1878 = vmatpush1.xpose.msra.mxu0 %v1845
    %1879 = vmatprep.subr.mxu0 0.0
    %1880 = vmatpush1.xpose.msra.mxu0 %v1847
    %1881 = vmatprep.subr.mxu0 0.0
    %1882 = vmatpush1.xpose.msra.mxu0 %v1849
    %1883 = vmatprep.subr.mxu0 0.0
    %1884 = vmatpush1.xpose.msra.mxu0 %v1851
    %1885 = vmatprep.subr.mxu0 0.0
    %1886 = vmatpush1.xpose.msra.mxu0 %v1853
    %1887 = vmatprep.subr.mxu0 0.0
    %1888 = vmatpush1.xpose.msra.mxu0 %v1855
    %1889 = vmatprep.subr.mxu0 0.0
    %1890 = vmatpush1.xpose.msra.mxu0 %v1857
    %1891 = vmatprep.subr.mxu0 0.0
    %1892 = vmatpush1.xpose.msra.mxu0 %v1859
    %1893 = vmatprep.subr.mxu0 0.0
    %1894 = vmatpush1.xpose.msra.mxu0 %v1861
    %1895 = vmatprep.subr.mxu0 0.0
    %1896 = vmatpush1.xpose.msra.mxu0 %v1863
    %1897 = vmatprep.subr.mxu0 0.0
    %1898 = vmatpush1.xpose.msra.mxu0 %v1865
    %1899 = vmatprep.subr.mxu0 0.0
    %1900 = vmatpush1.xpose.msra.mxu0 0.0
    %1901 = vmatprep.subr.mxu0 0.0
    %1902 = vmatpush1.xpose.msra.mxu0 0.0
    %1903 = vmatprep.subr.mxu0 0.0
    %1904 = vmatpush1.xpose.msra.mxu0 0.0
    %1905 = vmatprep.subr.mxu0 0.0
    %1906 = vmatpush1.xpose.msra.mxu0 0.0
    %1907 = vmatprep.subr.mxu0 0.0
    %1908 = vmatpush1.xpose.msra.mxu0 0.0
    %1909 = vmatprep.subr.mxu0 0.0
    %1910 = vmatpush1.xpose.msra.mxu0 0.0
    %1911 = vmatprep.subr.mxu0 0.0
    %1912 = vmatpush1.xpose.msra.mxu0 0.0
    %1913 = vmatprep.subr.mxu0 0.0
    %1914 = vmatpush1.xpose.msra.mxu0 0.0
    %1915 = vmatprep.subr.mxu0 0.0
    %1916 = vmatpush1.xpose.msra.mxu0 0.0
    %1917 = vmatprep.subr.mxu0 0.0
    %1918 = vmatpush1.xpose.msra.mxu0 0.0
    %1919 = vmatprep.subr.mxu0 0.0
    %1920 = vmatpush1.xpose.msra.mxu0 0.0
    %1921 = vmatprep.subr.mxu0 0.0
    %1922 = vmatpush1.xpose.msra.mxu0 0.0
    %1923 = vmatprep.subr.mxu0 0.0
    %1924 = vmatpush1.xpose.msra.mxu0 0.0
    %1925 = vmatprep.subr.mxu0 0.0
    %1926 = vmatpush1.xpose.msra.mxu0 0.0
    %1927 = vmatprep.subr.mxu0 0.0
    %1928 = vmatpush1.xpose.msra.mxu0 0.0
    %1929 = vmatprep.subr.mxu0 0.0
    %1930 = vmatpush1.xpose.msra.mxu0 0.0
    %1931 = vmatprep.mubr.f32.mxu0 0.0
    %1932 = vmatmul.mubr.f32.gmra.mrb[0].mxu0 %v1835
    %v1933 = vpop.f32.mrb[0].mxu0
    %v1934 = vadd.f32 0.0, %v1933
    %v1935 = vpop.f32.mrb[0].mxu0
    %1936 = vmatprep.mubr.f32.mxu0 0.0
    %1937 = vmatmul.mubr.f32.gmra.mrb[0].mxu0 %v1837
    %v1938 = vpop.f32.mrb[0].mxu0
    %v1939 = vadd.f32 0.0, %v1938
    %v1940 = vpop.f32.mrb[0].mxu0
    %1941 = vmatprep.mubr.f32.mxu0 0.0
    %1942 = vmatmul.mubr.f32.gmra.mrb[0].mxu0 %v1839
    %v1943 = vpop.f32.mrb[0].mxu0
    %v1944 = vadd.f32 0.0, %v1943
    %v1945 = vpop.f32.mrb[0].mxu0
    %1946 = vmatprep.mubr.f32.mxu0 0.0
    %1947 = vmatmul.mubr.f32.gmra.mrb[0].mxu0 %v1841
    %v1948 = vpop.f32.mrb[0].mxu0
    %v1949 = vadd.f32 0.0, %v1948
    %v1950 = vpop.f32.mrb[0].mxu0
    %1951 = vmatprep.mubr.f32.mxu0 0.0
    %1952 = vmatmul.mubr.f32.gmra.mrb[0].mxu0 %v1843
    %v1953 = vpop.f32.mrb[0].mxu0
    %v1954 = vadd.f32 0.0, %v1953
    %v1955 = vpop.f32.mrb[0].mxu0
    %1956 = vmatprep.mubr.f32.mxu0 0.0
    %1957 = vmatmul.mubr.f32.gmra.mrb[0].mxu0 %v1845
    %v1958 = vpop.f32.mrb[0].mxu0
    %v1959 = vadd.f32 0.0, %v1958
    %v1960 = vpop.f32.mrb[0].mxu0
    %1961 = vmatprep.mubr.f32.mxu0 0.0
    %1962 = vmatmul.mubr.f32.gmra.mrb[0].mxu0 %v1847
    %v1963 = vpop.f32.mrb[0].mxu0
    %v1964 = vadd.f32 0.0, %v1963
    %v1965 = vpop.f32.mrb[0].mxu0
    %1966 = vmatprep.mubr.f32.mxu0 0.0
    %1967 = vmatmul.mubr.f32.gmra.mrb[0].mxu0 %v1849
    %v1968 = vpop.f32.mrb[0].mxu0
    %v1969 = vadd.f32 0.0, %v1968
    %v1970 = vpop.f32.mrb[0].mxu0
    %1971 = vmatprep.mubr.f32.mxu0 0.0
    %1972 = vmatmul.mubr.f32.gmra.mrb[0].mxu0 %v1851
    %v1973 = vpop.f32.mrb[0].mxu0
    %v1974 = vadd.f32 0.0, %v1973
    %v1975 = vpop.f32.mrb[0].mxu0
    %1976 = vmatprep.mubr.f32.mxu0 0.0
    %1977 = vmatmul.mubr.f32.gmra.mrb[0].mxu0 %v1853
    %v1978 = vpop.f32.mrb[0].mxu0
    %v1979 = vadd.f32 0.0, %v1978
    %v1980 = vpop.f32.mrb[0].mxu0
    %1981 = vmatprep.mubr.f32.mxu0 0.0
    %1982 = vmatmul.mubr.f32.gmra.mrb[0].mxu0 %v1855
    %v1983 = vpop.f32.mrb[0].mxu0
    %v1984 = vadd.f32 0.0, %v1983
    %v1985 = vpop.f32.mrb[0].mxu0
    %1986 = vmatprep.mubr.f32.mxu0 0.0
    %1987 = vmatmul.mubr.f32.gmra.mrb[0].mxu0 %v1857
    %v1988 = vpop.f32.mrb[0].mxu0
    %v1989 = vadd.f32 0.0, %v1988
    %v1990 = vpop.f32.mrb[0].mxu0
    %1991 = vmatprep.mubr.f32.mxu0 0.0
    %1992 = vmatmul.mubr.f32.gmra.mrb[0].mxu0 %v1859
    %v1993 = vpop.f32.mrb[0].mxu0
    %v1994 = vadd.f32 0.0, %v1993
    %v1995 = vpop.f32.mrb[0].mxu0
    %1996 = vmatprep.mubr.f32.mxu0 0.0
    %1997 = vmatmul.mubr.f32.gmra.mrb[0].mxu0 %v1861
    %v1998 = vpop.f32.mrb[0].mxu0
    %v1999 = vadd.f32 0.0, %v1998
    %v2000 = vpop.f32.mrb[0].mxu0
    %2001 = vmatprep.mubr.f32.mxu0 0.0
    %2002 = vmatmul.mubr.f32.gmra.mrb[0].mxu0 %v1863
    %v2003 = vpop.f32.mrb[0].mxu0
    %v2004 = vadd.f32 0.0, %v2003
    %v2005 = vpop.f32.mrb[0].mxu0
    %2006 = vmatprep.mubr.f32.mxu0 0.0
    %2007 = vmatmul.mubr.f32.gmra.mrb[0].mxu0 %v1865
    %v2008 = vpop.f32.mrb[0].mxu0
    %v2009 = vadd.f32 0.0, %v2008
    %v2010 = vpop.f32.mrb[0].mxu0
    %2011 = vdwg.mxu0
    %v2012 = vsub.f32 %v30, %v1934
    %v2013 = vsub.f32 %v31, %v1939
    %v2014 = vsub.f32 %v32, %v1944
    %v2015 = vsub.f32 %v33, %v1949
    %v2016 = vsub.f32 %v34, %v1954
    %v2017 = vsub.f32 %v35, %v1959
    %v2018 = vsub.f32 %v36, %v1964
    %v2019 = vsub.f32 %v37, %v1969
    %v2020 = vsub.f32 %v38, %v1974
    %v2021 = vsub.f32 %v39, %v1979
    %v2022 = vsub.f32 %v40, %v1984
    %v2023 = vsub.f32 %v41, %v1989
    %v2024 = vsub.f32 %v42, %v1994
    %v2025 = vsub.f32 %v43, %v1999
    %v2026 = vsub.f32 %v44, %v2004
    %v2027 = vsub.f32 %v45, %v2009
    %v2028 = vmul.f32 %v2012, %v2012
    %v2029 = vmul.f32 %v2013, %v2013
    %v2030 = vmul.f32 %v2014, %v2014
    %v2031 = vmul.f32 %v2015, %v2015
    %v2032 = vmul.f32 %v2016, %v2016
    %v2033 = vmul.f32 %v2017, %v2017
    %v2034 = vmul.f32 %v2018, %v2018
    %v2035 = vmul.f32 %v2019, %v2019
    %v2036 = vmul.f32 %v2020, %v2020
    %v2037 = vmul.f32 %v2021, %v2021
    %v2038 = vmul.f32 %v2022, %v2022
    %v2039 = vmul.f32 %v2023, %v2023
    %v2040 = vmul.f32 %v2024, %v2024
    %v2041 = vmul.f32 %v2025, %v2025
    %v2042 = vmul.f32 %v2026, %v2026
    %v2043 = vmul.f32 %v2027, %v2027
    %2044 = vadd.xlane.f32.xlu0 %v2028
    %v2045 = vpop.xlane.xlu0 %2044
    %2046 = vadd.xlane.f32.xlu0 %v2029
    %v2047 = vpop.xlane.xlu0 %2046
    %2048 = vadd.xlane.f32.xlu0 %v2030
    %v2049 = vpop.xlane.xlu0 %2048
    %2050 = vadd.xlane.f32.xlu0 %v2031
    %v2051 = vpop.xlane.xlu0 %2050
    %2052 = vadd.xlane.f32.xlu0 %v2032
    %v2053 = vpop.xlane.xlu0 %2052
    %2054 = vadd.xlane.f32.xlu0 %v2033
    %v2055 = vpop.xlane.xlu0 %2054
    %2056 = vadd.xlane.f32.xlu0 %v2034
    %v2057 = vpop.xlane.xlu0 %2056
    %2058 = vadd.xlane.f32.xlu0 %v2035
    %v2059 = vpop.xlane.xlu0 %2058
    %2060 = vadd.xlane.f32.xlu0 %v2036
    %v2061 = vpop.xlane.xlu0 %2060
    %2062 = vadd.xlane.f32.xlu0 %v2037
    %v2063 = vpop.xlane.xlu0 %2062
    %2064 = vadd.xlane.f32.xlu0 %v2038
    %v2065 = vpop.xlane.xlu0 %2064
    %2066 = vadd.xlane.f32.xlu0 %v2039
    %v2067 = vpop.xlane.xlu0 %2066
    %2068 = vadd.xlane.f32.xlu0 %v2040
    %v2069 = vpop.xlane.xlu0 %2068
    %2070 = vadd.xlane.f32.xlu0 %v2041
    %v2071 = vpop.xlane.xlu0 %2070
    %2072 = vadd.xlane.f32.xlu0 %v2042
    %v2073 = vpop.xlane.xlu0 %2072
    %2074 = vadd.xlane.f32.xlu0 %v2043
    %v2075 = vpop.xlane.xlu0 %2074
    %v2076 = vsel %vm465, %v739, 0.0
    %2077 = vadd.xlane.f32.xlu0 %v2076
    %v2078 = vpop.xlane.xlu0 %2077
    %v2079 = vsel %vm465, %v741, 0.0
    %2080 = vadd.xlane.f32.xlu0 %v2079
    %v2081 = vpop.xlane.xlu0 %2080
    %v2082 = vsel %vm465, %v743, 0.0
    %2083 = vadd.xlane.f32.xlu0 %v2082
    %v2084 = vpop.xlane.xlu0 %2083
    %v2085 = vsel %vm465, %v745, 0.0
    %2086 = vadd.xlane.f32.xlu0 %v2085
    %v2087 = vpop.xlane.xlu0 %2086
    %v2088 = vsel %vm465, %v747, 0.0
    %2089 = vadd.xlane.f32.xlu0 %v2088
    %v2090 = vpop.xlane.xlu0 %2089
    %v2091 = vsel %vm465, %v749, 0.0
    %2092 = vadd.xlane.f32.xlu0 %v2091
    %v2093 = vpop.xlane.xlu0 %2092
    %v2094 = vsel %vm465, %v751, 0.0
    %2095 = vadd.xlane.f32.xlu0 %v2094
    %v2096 = vpop.xlane.xlu0 %2095
    %v2097 = vsel %vm465, %v753, 0.0
    %2098 = vadd.xlane.f32.xlu0 %v2097
    %v2099 = vpop.xlane.xlu0 %2098
    %v2100 = vsel %vm465, %v755, 0.0
    %2101 = vadd.xlane.f32.xlu0 %v2100
    %v2102 = vpop.xlane.xlu0 %2101
    %v2103 = vsel %vm465, %v757, 0.0
    %2104 = vadd.xlane.f32.xlu0 %v2103
    %v2105 = vpop.xlane.xlu0 %2104
    %v2106 = vsel %vm465, %v759, 0.0
    %2107 = vadd.xlane.f32.xlu0 %v2106
    %v2108 = vpop.xlane.xlu0 %2107
    %v2109 = vsel %vm465, %v761, 0.0
    %2110 = vadd.xlane.f32.xlu0 %v2109
    %v2111 = vpop.xlane.xlu0 %2110
    %v2112 = vsel %vm465, %v763, 0.0
    %2113 = vadd.xlane.f32.xlu0 %v2112
    %v2114 = vpop.xlane.xlu0 %2113
    %v2115 = vsel %vm465, %v765, 0.0
    %2116 = vadd.xlane.f32.xlu0 %v2115
    %v2117 = vpop.xlane.xlu0 %2116
    %v2118 = vsel %vm465, %v767, 0.0
    %2119 = vadd.xlane.f32.xlu0 %v2118
    %v2120 = vpop.xlane.xlu0 %2119
    %v2121 = vsel %vm465, %v769, 0.0
    %2122 = vadd.xlane.f32.xlu0 %v2121
    %v2123 = vpop.xlane.xlu0 %2122
    %v2124 = vrcp.pop %v2078
    %v2125 = vmul.f32 %v739, %v2124
    %v2126 = vrcp.pop %v2081
    %v2127 = vmul.f32 %v741, %v2126
    %v2128 = vrcp.pop %v2084
    %v2129 = vmul.f32 %v743, %v2128
    %v2130 = vrcp.pop %v2087
    %v2131 = vmul.f32 %v745, %v2130
    %v2132 = vrcp.pop %v2090
    %v2133 = vmul.f32 %v747, %v2132
    %v2134 = vrcp.pop %v2093
    %v2135 = vmul.f32 %v749, %v2134
    %v2136 = vrcp.pop %v2096
    %v2137 = vmul.f32 %v751, %v2136
    %v2138 = vrcp.pop %v2099
    %v2139 = vmul.f32 %v753, %v2138
    %v2140 = vrcp.pop %v2102
    %v2141 = vmul.f32 %v755, %v2140
    %v2142 = vrcp.pop %v2105
    %v2143 = vmul.f32 %v757, %v2142
    %v2144 = vrcp.pop %v2108
    %v2145 = vmul.f32 %v759, %v2144
    %v2146 = vrcp.pop %v2111
    %v2147 = vmul.f32 %v761, %v2146
    %v2148 = vrcp.pop %v2114
    %v2149 = vmul.f32 %v763, %v2148
    %v2150 = vrcp.pop %v2117
    %v2151 = vmul.f32 %v765, %v2150
    %v2152 = vrcp.pop %v2120
    %v2153 = vmul.f32 %v767, %v2152
    %v2154 = vrcp.pop %v2123
    %v2155 = vmul.f32 %v769, %v2154
    %v2156 = vmax.f32 %v2125, 1.1920929e-07
    %v2157 = vmax.f32 %v2127, 1.1920929e-07
    %v2158 = vmax.f32 %v2129, 1.1920929e-07
    %v2159 = vmax.f32 %v2131, 1.1920929e-07
    %v2160 = vmax.f32 %v2133, 1.1920929e-07
    %v2161 = vmax.f32 %v2135, 1.1920929e-07
    %v2162 = vmax.f32 %v2137, 1.1920929e-07
    %v2163 = vmax.f32 %v2139, 1.1920929e-07
    %v2164 = vmax.f32 %v2141, 1.1920929e-07
    %v2165 = vmax.f32 %v2143, 1.1920929e-07
    %v2166 = vmax.f32 %v2145, 1.1920929e-07
    %v2167 = vmax.f32 %v2147, 1.1920929e-07
    %v2168 = vmax.f32 %v2149, 1.1920929e-07
    %v2169 = vmax.f32 %v2151, 1.1920929e-07
    %v2170 = vmax.f32 %v2153, 1.1920929e-07
    %v2171 = vmax.f32 %v2155, 1.1920929e-07
    %v2172 = vmin.f32 %v2156, 0.9999999
    %v2173 = vmin.f32 %v2157, 0.9999999
    %v2174 = vmin.f32 %v2158, 0.9999999
    %v2175 = vmin.f32 %v2159, 0.9999999
    %v2176 = vmin.f32 %v2160, 0.9999999
    %v2177 = vmin.f32 %v2161, 0.9999999
    %v2178 = vmin.f32 %v2162, 0.9999999
    %v2179 = vmin.f32 %v2163, 0.9999999
    %v2180 = vmin.f32 %v2164, 0.9999999
    %v2181 = vmin.f32 %v2165, 0.9999999
    %v2182 = vmin.f32 %v2166, 0.9999999
    %v2183 = vmin.f32 %v2167, 0.9999999
    %v2184 = vmin.f32 %v2168, 0.9999999
    %v2185 = vmin.f32 %v2169, 0.9999999
    %v2186 = vmin.f32 %v2170, 0.9999999
    %v2187 = vmin.f32 %v2171, 0.9999999
    %v2188 = vlog2.pop %v2172
    %v2189 = vmul.f32 %v2188, 0.6931472
    %v2190 = vlog2.pop %v2173
    %v2191 = vmul.f32 %v2190, 0.6931472
    %v2192 = vlog2.pop %v2174
    %v2193 = vmul.f32 %v2192, 0.6931472
    %v2194 = vlog2.pop %v2175
    %v2195 = vmul.f32 %v2194, 0.6931472
    %v2196 = vlog2.pop %v2176
    %v2197 = vmul.f32 %v2196, 0.6931472
    %v2198 = vlog2.pop %v2177
    %v2199 = vmul.f32 %v2198, 0.6931472
    %v2200 = vlog2.pop %v2178
    %v2201 = vmul.f32 %v2200, 0.6931472
    %v2202 = vlog2.pop %v2179
    %v2203 = vmul.f32 %v2202, 0.6931472
    %v2204 = vlog2.pop %v2180
    %v2205 = vmul.f32 %v2204, 0.6931472
    %v2206 = vlog2.pop %v2181
    %v2207 = vmul.f32 %v2206, 0.6931472
    %v2208 = vlog2.pop %v2182
    %v2209 = vmul.f32 %v2208, 0.6931472
    %v2210 = vlog2.pop %v2183
    %v2211 = vmul.f32 %v2210, 0.6931472
    %v2212 = vlog2.pop %v2184
    %v2213 = vmul.f32 %v2212, 0.6931472
    %v2214 = vlog2.pop %v2185
    %v2215 = vmul.f32 %v2214, 0.6931472
    %v2216 = vlog2.pop %v2186
    %v2217 = vmul.f32 %v2216, 0.6931472
    %v2218 = vlog2.pop %v2187
    %v2219 = vmul.f32 %v2218, 0.6931472
    %v2220 = vmul.f32 %v2125, %v2189
    %v2221 = vmul.f32 %v2127, %v2191
    %v2222 = vmul.f32 %v2129, %v2193
    %v2223 = vmul.f32 %v2131, %v2195
    %v2224 = vmul.f32 %v2133, %v2197
    %v2225 = vmul.f32 %v2135, %v2199
    %v2226 = vmul.f32 %v2137, %v2201
    %v2227 = vmul.f32 %v2139, %v2203
    %v2228 = vmul.f32 %v2141, %v2205
    %v2229 = vmul.f32 %v2143, %v2207
    %v2230 = vmul.f32 %v2145, %v2209
    %v2231 = vmul.f32 %v2147, %v2211
    %v2232 = vmul.f32 %v2149, %v2213
    %v2233 = vmul.f32 %v2151, %v2215
    %v2234 = vmul.f32 %v2153, %v2217
    %v2235 = vmul.f32 %v2155, %v2219
    %v2236 = vsel %vm465, %v2220, 0.0
    %2237 = vadd.xlane.f32.xlu0 %v2236
    %v2238 = vpop.xlane.xlu0 %2237
    %v2239 = vsel %vm465, %v2221, 0.0
    %2240 = vadd.xlane.f32.xlu0 %v2239
    %v2241 = vpop.xlane.xlu0 %2240
    %v2242 = vsel %vm465, %v2222, 0.0
    %2243 = vadd.xlane.f32.xlu0 %v2242
    %v2244 = vpop.xlane.xlu0 %2243
    %v2245 = vsel %vm465, %v2223, 0.0
    %2246 = vadd.xlane.f32.xlu0 %v2245
    %v2247 = vpop.xlane.xlu0 %2246
    %v2248 = vsel %vm465, %v2224, 0.0
    %2249 = vadd.xlane.f32.xlu0 %v2248
    %v2250 = vpop.xlane.xlu0 %2249
    %v2251 = vsel %vm465, %v2225, 0.0
    %2252 = vadd.xlane.f32.xlu0 %v2251
    %v2253 = vpop.xlane.xlu0 %2252
    %v2254 = vsel %vm465, %v2226, 0.0
    %2255 = vadd.xlane.f32.xlu0 %v2254
    %v2256 = vpop.xlane.xlu0 %2255
    %v2257 = vsel %vm465, %v2227, 0.0
    %2258 = vadd.xlane.f32.xlu0 %v2257
    %v2259 = vpop.xlane.xlu0 %2258
    %v2260 = vsel %vm465, %v2228, 0.0
    %2261 = vadd.xlane.f32.xlu0 %v2260
    %v2262 = vpop.xlane.xlu0 %2261
    %v2263 = vsel %vm465, %v2229, 0.0
    %2264 = vadd.xlane.f32.xlu0 %v2263
    %v2265 = vpop.xlane.xlu0 %2264
    %v2266 = vsel %vm465, %v2230, 0.0
    %2267 = vadd.xlane.f32.xlu0 %v2266
    %v2268 = vpop.xlane.xlu0 %2267
    %v2269 = vsel %vm465, %v2231, 0.0
    %2270 = vadd.xlane.f32.xlu0 %v2269
    %v2271 = vpop.xlane.xlu0 %2270
    %v2272 = vsel %vm465, %v2232, 0.0
    %2273 = vadd.xlane.f32.xlu0 %v2272
    %v2274 = vpop.xlane.xlu0 %2273
    %v2275 = vsel %vm465, %v2233, 0.0
    %2276 = vadd.xlane.f32.xlu0 %v2275
    %v2277 = vpop.xlane.xlu0 %2276
    %v2278 = vsel %vm465, %v2234, 0.0
    %2279 = vadd.xlane.f32.xlu0 %v2278
    %v2280 = vpop.xlane.xlu0 %2279
    %v2281 = vsel %vm465, %v2235, 0.0
    %2282 = vadd.xlane.f32.xlu0 %v2281
    %v2283 = vpop.xlane.xlu0 %2282
    %v2284 = vsub.f32 0.0, %v2238
    %v2285 = vsub.f32 0.0, %v2241
    %v2286 = vsub.f32 0.0, %v2244
    %v2287 = vsub.f32 0.0, %v2247
    %v2288 = vsub.f32 0.0, %v2250
    %v2289 = vsub.f32 0.0, %v2253
    %v2290 = vsub.f32 0.0, %v2256
    %v2291 = vsub.f32 0.0, %v2259
    %v2292 = vsub.f32 0.0, %v2262
    %v2293 = vsub.f32 0.0, %v2265
    %v2294 = vsub.f32 0.0, %v2268
    %v2295 = vsub.f32 0.0, %v2271
    %v2296 = vsub.f32 0.0, %v2274
    %v2297 = vsub.f32 0.0, %v2277
    %v2298 = vsub.f32 0.0, %v2280
    %v2299 = vsub.f32 0.0, %v2283
    %vm2300 = vcmask 7168
    %v2301 = vsel %vm2300, %v2045, %v2284
    %v2302 = vsel %vm2300, %v2047, %v2285
    %v2303 = vsel %vm2300, %v2049, %v2286
    %v2304 = vsel %vm2300, %v2051, %v2287
    %v2305 = vsel %vm2300, %v2053, %v2288
    %v2306 = vsel %vm2300, %v2055, %v2289
    %v2307 = vsel %vm2300, %v2057, %v2290
    %v2308 = vsel %vm2300, %v2059, %v2291
    %v2309 = vsel %vm2300, %v2061, %v2292
    %v2310 = vsel %vm2300, %v2063, %v2293
    %v2311 = vsel %vm2300, %v2065, %v2294
    %v2312 = vsel %vm2300, %v2067, %v2295
    %v2313 = vsel %vm2300, %v2069, %v2296
    %v2314 = vsel %vm2300, %v2071, %v2297
    %v2315 = vsel %vm2300, %v2073, %v2298
    %v2316 = vsel %vm2300, %v2075, %v2299
    %2331 = vrot.lane.b32.xlu0 %v12, 64
    %v2332 = vpop.permute.xlu0 %2331
    %2333 = vrot.lane.b32.xlu0 %v13, 64
    %v2334 = vpop.permute.xlu0 %2333
    %2335 = vrot.lane.b32.xlu0 %v14, 64
    %v2336 = vpop.permute.xlu0 %2335
    %2337 = vrot.lane.b32.xlu0 %v15, 64
    %v2338 = vpop.permute.xlu0 %2337
    %2339 = vrot.lane.b32.xlu0 %v16, 64
    %v2340 = vpop.permute.xlu0 %2339
    %2341 = vrot.lane.b32.xlu0 %v17, 64
    %v2342 = vpop.permute.xlu0 %2341
    %2343 = vrot.lane.b32.xlu0 %v18, 64
    %v2344 = vpop.permute.xlu0 %2343
    %2345 = vrot.lane.b32.xlu0 %v19, 64
    %v2346 = vpop.permute.xlu0 %2345
    %2347 = vrot.lane.b32.xlu0 %v20, 64
    %v2348 = vpop.permute.xlu0 %2347
    %2349 = vrot.lane.b32.xlu0 %v21, 64
    %v2350 = vpop.permute.xlu0 %2349
    %2351 = vrot.lane.b32.xlu0 %v22, 64
    %v2352 = vpop.permute.xlu0 %2351
    %2353 = vrot.lane.b32.xlu0 %v23, 64
    %v2354 = vpop.permute.xlu0 %2353
    %2355 = vrot.lane.b32.xlu0 %v24, 64
    %v2356 = vpop.permute.xlu0 %2355
    %2357 = vrot.lane.b32.xlu0 %v25, 64
    %v2358 = vpop.permute.xlu0 %2357
    %2359 = vrot.lane.b32.xlu0 %v26, 64
    %v2360 = vpop.permute.xlu0 %2359
    %2361 = vrot.lane.b32.xlu0 %v27, 64
    %v2362 = vpop.permute.xlu0 %2361
    %2379 = vxpose.xlu0.b32.start [1/16] %v2332, 128
    %2380 = vxpose.xlu0.b32.cont [2/16] %v2334, 128
    %2381 = vxpose.xlu0.b32.cont [3/16] %v2336, 128
    %2382 = vxpose.xlu0.b32.cont [4/16] %v2338, 128
    %2383 = vxpose.xlu0.b32.cont [5/16] %v2340, 128
    %2384 = vxpose.xlu0.b32.cont [6/16] %v2342, 128
    %2385 = vxpose.xlu0.b32.cont [7/16] %v2344, 128
    %2386 = vxpose.xlu0.b32.cont [8/16] %v2346, 128
    %2387 = vxpose.xlu0.b32.cont [9/16] %v2348, 128
    %2388 = vxpose.xlu0.b32.cont [10/16] %v2350, 128
    %2389 = vxpose.xlu0.b32.cont [11/16] %v2352, 128
    %2390 = vxpose.xlu0.b32.cont [12/16] %v2354, 128
    %2391 = vxpose.xlu0.b32.cont [13/16] %v2356, 128
    %2392 = vxpose.xlu0.b32.cont [14/16] %v2358, 128
    %2393 = vxpose.xlu0.b32.cont [15/16] %v2360, 128
    %2394 = vxpose.xlu0.b32.end [16/16] %v2362, 128
    %v2395 = vpop.trf.xlu0
    %v2396 = vpop.trf.xlu0
    %v2397 = vpop.trf.xlu0
    %v2398 = vpop.trf.xlu0
    %v2399 = vpop.trf.xlu0
    %v2400 = vpop.trf.xlu0
    %v2401 = vpop.trf.xlu0
    %v2402 = vpop.trf.xlu0
    %v2403 = vpop.trf.xlu0
    %v2404 = vpop.trf.xlu0
    %v2405 = vpop.trf.xlu0
    %v2406 = vpop.trf.xlu0
    %v2407 = vpop.trf.xlu0
    %v2408 = vpop.trf.xlu0
    %v2409 = vpop.trf.xlu0
    %v2410 = vpop.trf.xlu0
    %2411 = vmatprep.subr.mxu0 0.0
    %2412 = vmatpush1.msra.mxu0 %v2301
    %2413 = vmatprep.subr.mxu0 0.0
    %2414 = vmatpush1.msra.mxu0 %v2302
    %2415 = vmatprep.subr.mxu0 0.0
    %2416 = vmatpush1.msra.mxu0 %v2303
    %2417 = vmatprep.subr.mxu0 0.0
    %2418 = vmatpush1.msra.mxu0 %v2304
    %2419 = vmatprep.subr.mxu0 0.0
    %2420 = vmatpush1.msra.mxu0 %v2305
    %2421 = vmatprep.subr.mxu0 0.0
    %2422 = vmatpush1.msra.mxu0 %v2306
    %2423 = vmatprep.subr.mxu0 0.0
    %2424 = vmatpush1.msra.mxu0 %v2307
    %2425 = vmatprep.subr.mxu0 0.0
    %2426 = vmatpush1.msra.mxu0 %v2308
    %2427 = vmatprep.subr.mxu0 0.0
    %2428 = vmatpush1.msra.mxu0 %v2309
    %2429 = vmatprep.subr.mxu0 0.0
    %2430 = vmatpush1.msra.mxu0 %v2310
    %2431 = vmatprep.subr.mxu0 0.0
    %2432 = vmatpush1.msra.mxu0 %v2311
    %2433 = vmatprep.subr.mxu0 0.0
    %2434 = vmatpush1.msra.mxu0 %v2312
    %2435 = vmatprep.subr.mxu0 0.0
    %2436 = vmatpush1.msra.mxu0 %v2313
    %2437 = vmatprep.subr.mxu0 0.0
    %2438 = vmatpush1.msra.mxu0 %v2314
    %2439 = vmatprep.subr.mxu0 0.0
    %2440 = vmatpush1.msra.mxu0 %v2315
    %2441 = vmatprep.subr.mxu0 0.0
    %2442 = vmatpush1.msra.mxu0 %v2316
    %2443 = vmatprep.subr.mxu0 0.0
    %2444 = vmatpush1.msra.mxu0 0.0
    %2445 = vmatprep.subr.mxu0 0.0
    %2446 = vmatpush1.msra.mxu0 0.0
    %2447 = vmatprep.subr.mxu0 0.0
    %2448 = vmatpush1.msra.mxu0 0.0
    %2449 = vmatprep.subr.mxu0 0.0
    %2450 = vmatpush1.msra.mxu0 0.0
    %2451 = vmatprep.subr.mxu0 0.0
    %2452 = vmatpush1.msra.mxu0 0.0
    %2453 = vmatprep.subr.mxu0 0.0
    %2454 = vmatpush1.msra.mxu0 0.0
    %2455 = vmatprep.subr.mxu0 0.0
    %2456 = vmatpush1.msra.mxu0 0.0
    %2457 = vmatprep.subr.mxu0 0.0
    %2458 = vmatpush1.msra.mxu0 0.0
    %2459 = vmatprep.subr.mxu0 0.0
    %2460 = vmatpush1.msra.mxu0 0.0
    %2461 = vmatprep.subr.mxu0 0.0
    %2462 = vmatpush1.msra.mxu0 0.0
    %2463 = vmatprep.subr.mxu0 0.0
    %2464 = vmatpush1.msra.mxu0 0.0
    %2465 = vmatprep.subr.mxu0 0.0
    %2466 = vmatpush1.msra.mxu0 0.0
    %2467 = vmatprep.subr.mxu0 0.0
    %2468 = vmatpush1.msra.mxu0 0.0
    %2469 = vmatprep.subr.mxu0 0.0
    %2470 = vmatpush1.msra.mxu0 0.0
    %2471 = vmatprep.subr.mxu0 0.0
    %2472 = vmatpush1.msra.mxu0 0.0
    %2473 = vmatprep.subr.mxu0 0.0
    %2474 = vmatpush1.msra.mxu0 0.0
    %2475 = vmatprep.mubr.f32.mxu0 0.0
    %2476 = vmatmul.mubr.f32.gmra.mrb[0].mxu0 %v2395
    %v2477 = vpop.f32.mrb[0].mxu0
    %v2478 = vadd.f32 0.0, %v2477
    %v2479 = vpop.f32.mrb[0].mxu0
    %2480 = vmatprep.mubr.f32.mxu0 0.0
    %2481 = vmatmul.mubr.f32.gmra.mrb[0].mxu0 %v2396
    %v2482 = vpop.f32.mrb[0].mxu0
    %v2483 = vadd.f32 0.0, %v2482
    %v2484 = vpop.f32.mrb[0].mxu0
    %2485 = vmatprep.mubr.f32.mxu0 0.0
    %2486 = vmatmul.mubr.f32.gmra.mrb[0].mxu0 %v2397
    %v2487 = vpop.f32.mrb[0].mxu0
    %v2488 = vadd.f32 0.0, %v2487
    %v2489 = vpop.f32.mrb[0].mxu0
    %2490 = vmatprep.mubr.f32.mxu0 0.0
    %2491 = vmatmul.mubr.f32.gmra.mrb[0].mxu0 %v2398
    %v2492 = vpop.f32.mrb[0].mxu0
    %v2493 = vadd.f32 0.0, %v2492
    %v2494 = vpop.f32.mrb[0].mxu0
    %2495 = vdwg.mxu0
    %v2496 = vrsqrt.pop %v2478
    %v2497 = vmul.f32 %v2478, %v2496
    %vm2498 = vcmp.eq.f32.partialorder %v2478, inf
    %v2499 = vsel %vm2498, %v2478, %v2497
    %vm2500 = vcmp.eq.f32.partialorder %v2478, 0.0
    %v2501 = vand.u32 %v2478, 2147483648
    %v2502 = vsel %vm2500, %v2501, %v2499
    %v2503 = vrsqrt.pop %v2483
    %v2504 = vmul.f32 %v2483, %v2503
    %vm2505 = vcmp.eq.f32.partialorder %v2483, inf
    %v2506 = vsel %vm2505, %v2483, %v2504
    %vm2507 = vcmp.eq.f32.partialorder %v2483, 0.0
    %v2508 = vand.u32 %v2483, 2147483648
    %v2509 = vsel %vm2507, %v2508, %v2506
    %v2510 = vrsqrt.pop %v2488
    %v2511 = vmul.f32 %v2488, %v2510
    %vm2512 = vcmp.eq.f32.partialorder %v2488, inf
    %v2513 = vsel %vm2512, %v2488, %v2511
    %vm2514 = vcmp.eq.f32.partialorder %v2488, 0.0
    %v2515 = vand.u32 %v2488, 2147483648
    %v2516 = vsel %vm2514, %v2515, %v2513
    %v2517 = vrsqrt.pop %v2493
    %v2518 = vmul.f32 %v2493, %v2517
    %vm2519 = vcmp.eq.f32.partialorder %v2493, inf
    %v2520 = vsel %vm2519, %v2493, %v2518
    %vm2521 = vcmp.eq.f32.partialorder %v2493, 0.0
    %v2522 = vand.u32 %v2493, 2147483648
    %v2523 = vsel %vm2521, %v2522, %v2520
    %v2524 = vmul.f32 %v2502, 0.0009765625
    %v2525 = vmul.f32 %v2509, 0.0009765625
    %v2526 = vmul.f32 %v2516, 0.0009765625
    %v2527 = vmul.f32 %v2523, 0.0009765625
    %2532 = vrot.lane.b32.xlu0 %v2524, 40
    %v2533 = vpop.permute.xlu0 %2532
    %2534 = vrot.lane.b32.xlu0 %v2525, 40
    %v2535 = vpop.permute.xlu0 %2534
    %2536 = vrot.lane.b32.xlu0 %v2526, 40
    %v2537 = vpop.permute.xlu0 %2536
    %2538 = vrot.lane.b32.xlu0 %v2527, 40
    %v2539 = vpop.permute.xlu0 %2538
    %2548 = vrot.lane.b32.xlu0 %v2478, 40
    %v2549 = vpop.permute.xlu0 %2548
    %2550 = vrot.lane.b32.xlu0 %v2483, 40
    %v2551 = vpop.permute.xlu0 %2550
    %2552 = vrot.lane.b32.xlu0 %v2488, 40
    %v2553 = vpop.permute.xlu0 %2552
    %2554 = vrot.lane.b32.xlu0 %v2493, 40
    %v2555 = vpop.permute.xlu0 %2554
    %vm2560 = vcmask 326656
    %v2561 = vsel %vm2560, %v1816, %v2533
    %v2562 = vsel %vm2560, %v1821, %v2535
    %v2563 = vsel %vm2560, %v1826, %v2537
    %v2564 = vsel %vm2560, %v1831, %v2539
    %vm2565 = vcmask 334848
    %v2566 = vsel %vm2565, %v2561, %v2549
    %v2567 = vsel %vm2565, %v2562, %v2551
    %v2568 = vsel %vm2565, %v2563, %v2553
    %v2569 = vsel %vm2565, %v2564, %v2555
    %vm2570 = vcmask 343040
    %v2571 = vsel %vm2570, %v2566, 0.0
    %v2572 = vsel %vm2570, %v2567, 0.0
    %v2573 = vsel %vm2570, %v2568, 0.0
    %v2574 = vsel %vm2570, %v2569, 0.0
    %2575 = vst [vmem:[#allocation2] sm:$0xff] %v2571
    %2576 = vst [vmem:[#allocation2 + $0x8] sm:$0xff] %v2572
    %2577 = vst [vmem:[#allocation2 + $0x10] sm:$0xff] %v2573
    %2578 = vst [vmem:[#allocation2 + $0x18] sm:$0xff] %v2574
    // Predicated region
    $region10: #{tpu_custom_call.1} parent=1 // pred_check
      _
    $region11: #{tpu_custom_call.1} parent=1 // pred_check_branch
      %2580 = sbr.rel (0) target = $region13
    $region12: #{tpu_custom_call.1} parent=1 // pred_region
      %s2582 = ssub.s32 512, 512
      %2583 = vsyncadd [#allocation3], %s2582
      %s2584 = sshll.u32 [#allocation2], 4
      %s2585 = int_to_ptr.vmem [resolvable:$true] %s2584
      %2590 = dma.vmem_to_hbm [thread:$0]  %s2585, 512, %s2, [#allocation3], 128, 128, 8
    $region13: #{tpu_custom_call.1} parent=1 // pred_fallthru
      _
    // Predicated region
    $region14: #{tpu_custom_call.1} parent=1 // pred_check
      _
    $region15: #{tpu_custom_call.1} parent=1 // pred_check_branch
      %2592 = sbr.rel (0) target = $region17
    $region16: #{tpu_custom_call.1} parent=1 // pred_region
      %2593 = dma.done [#allocation3], 512
    $region17: #{tpu_custom_call.1} parent=1 // pred_fallthru
      _
    %2594 = vsyncpa [#allocation3], 1

</llo_original>
